<compile_context>
chip_gen: v7x
topology: tpu7x:2x2x1
jax: 0.10.0
libtpu: 0.0.40
codegen_flags: <defaults>
</compile_context>

<pallas_src>
from functools import partial

import numpy as np
import jax
import jax.numpy as jnp
from jax.experimental import pallas as pl
from jax.experimental.pallas import tpu as pltpu


def _round_up(x, m):
    return ((x + m - 1) // m) * m


def _reorder_ifog(a):
    """PyTorch gate order [i,f,g,o] (last dim = 4H) -> packed order [i,f,o,g]."""
    i, f, g, o = jnp.split(a, 4, axis=-1)
    return jnp.concatenate([i, f, o, g], axis=-1)


# ------------------------------- fused kernel -------------------------------

def _make_decoder_kernel(layers: int, hidden: int):
    """Kernel closed over static layer count / hidden size. Grid = (T,)."""
    L, H = layers, hidden

    def kernel(*refs):
        # inputs : x_seq, h0, c0, (W_l, b_l) * L, w_out_t, b_out
        # outputs: y_seq, h_n, c_n
        # scratch: h_state, c_state  (carried across the T grid axis)
        x_ref, h0_ref, c0_ref = refs[0:3]
        layer_refs = refs[3:3 + 2 * L]
        w_out_ref, b_out_ref = refs[3 + 2 * L:5 + 2 * L]
        y_ref, h_out_ref, c_out_ref = refs[5 + 2 * L:8 + 2 * L]
        h_st, c_st = refs[8 + 2 * L:]

        t = pl.program_id(0)

        @pl.when(t == 0)
        def _():
            h_st[...] = h0_ref[...]
            c_st[...] = c0_ref[...]

        x = x_ref[0]                                     # (1, I_pad) f32
        for l in range(L):                               # static unroll (small L)
            w_ref = layer_refs[2 * l]                    # (in_pad_l + H, 4H) bf16
            b_ref = layer_refs[2 * l + 1]                # (1, 4H) f32 fused bias
            h = h_st[l:l + 1, :]                         # (1, H) f32
            c = c_st[l:l + 1, :]                         # (1, H) f32

            xh = jnp.concatenate([x.astype(jnp.bfloat16),
                                  h.astype(jnp.bfloat16)], axis=-1)
            gates = (jnp.dot(xh, w_ref[...],
                             preferred_element_type=jnp.float32)
                     + b_ref[...])                       # (1, 4H) f32

            # packed gate order: [i, f, o, g]
            sig = jax.nn.sigmoid(gates[:, :3 * H])
            i_g = sig[:, 0:H]
            f_g = sig[:, H:2 * H]
            o_g = sig[:, 2 * H:3 * H]
            g_g = jnp.tanh(gates[:, 3 * H:])

            c_new = f_g * c + i_g * g_g
            h_new = o_g * jnp.tanh(c_new)

            h_st[l:l + 1, :] = h_new
            c_st[l:l + 1, :] = c_new
            x = h_new                                    # feed next layer

        # output Linear (H -> V_pad) + numerically stable log-softmax (f32).
        logits = (jnp.dot(x.astype(jnp.bfloat16), w_out_ref[...],
                          preferred_element_type=jnp.float32)
                  + b_out_ref[...])                      # (1, V_pad)
        m = jnp.max(logits, axis=-1, keepdims=True)
        lse = jnp.log(jnp.sum(jnp.exp(logits - m), axis=-1, keepdims=True)) + m
        y_ref[0] = logits - lse

        # final hidden state written once per sequence
        @pl.when(t == pl.num_programs(0) - 1)
        def _():
            h_out_ref[...] = h_st[...]
            c_out_ref[...] = c_st[...]

    return kernel


@partial(jax.jit, static_argnames=("layers", "hidden", "in_pad", "vocab_pad"))
def _decoder_forward(x_seq, h0, c0, packed_w, packed_b, w_out_t, b_out,
                     *, layers, hidden, in_pad, vocab_pad):
    """Runs T LSTM steps + projection + log-softmax in a single pallas_call."""
    T = x_seq.shape[0]
    L, H = layers, hidden
    kernel = _make_decoder_kernel(L, H)

    def const(shape):                       # weight-resident: same block every t
        return pl.BlockSpec(shape, lambda t: (0,) * len(shape))

    in_specs = [pl.BlockSpec((1, 1, in_pad), lambda t: (t, 0, 0)),   # x_seq
                const((L, H)),                                        # h0
                const((L, H))]                                        # c0
    args = [x_seq, h0, c0]
    for w, b in zip(packed_w, packed_b):
        in_specs += [const(w.shape), const(b.shape)]
        args += [w, b]
    in_specs += [const(w_out_t.shape), const(b_out.shape)]
    args += [w_out_t, b_out]

    out_shape = (jax.ShapeDtypeStruct((T, 1, vocab_pad), jnp.float32),
                 jax.ShapeDtypeStruct((L, H), jnp.float32),
                 jax.ShapeDtypeStruct((L, H), jnp.float32))
    out_specs = (pl.BlockSpec((1, 1, vocab_pad), lambda t: (t, 0, 0)),
                 const((L, H)),
                 const((L, H)))

    # explicit scoped-VMEM budget: (over-counted) I/O x2 for double-buffering,
    # plus scratch and generous headroom.  Tiny here (~10 MiB), safe on v5e/v6e/v7x.
    arg_bytes = sum(int(np.prod(a.shape)) * jnp.dtype(a.dtype).itemsize
                    for a in args)
    out_bytes = (T * vocab_pad + 2 * L * H) * 4
    scratch_bytes = 2 * L * H * 4
    vmem_limit = int(2 * (arg_bytes + out_bytes) + scratch_bytes) + (8 << 20)

    return pl.pallas_call(
        kernel,
        grid=(T,),
        out_shape=out_shape,
        in_specs=in_specs,
        out_specs=out_specs,
        scratch_shapes=[pltpu.VMEM((L, H), jnp.float32),
                        pltpu.VMEM((L, H), jnp.float32)],
        compiler_params=pltpu.CompilerParams(
            dimension_semantics=("arbitrary",),       # T carries h/c state
            vmem_limit_bytes=vmem_limit),
    )(*args)


# ------------------------------ module wrapper ------------------------------

class DecoderRNNPallas:
    """JAX/Pallas re-implementation of the PyTorch DecoderRNN forward pass."""

    def __init__(self, input_size, output_size, layers=1, key=None):
        self.input_size = input_size
        self.hidden_size = output_size
        self.layers = layers
        self.vocab = input_size                     # nn.Linear(hidden, input_size)
        self.in_pad = _round_up(input_size, 128)    # lane-dense layer-0 input
        self.vocab_pad = _round_up(self.vocab, 128)  # lane-dense logits
        if key is None:
            key = jax.random.PRNGKey(0)
        bound = 1.0 / np.sqrt(output_size)
        H = output_size

        # Weights are quantized to bf16 once at init (MXU-native on v5e/v6e/v7x);
        # raw_params keep the exact same (bf16-rounded) values in f32 so the
        # pure-JAX reference shares identical weights.
        self.raw_params = []    # PyTorch-layout params (for the reference)
        self.packed_w = []      # [wih.T (padded) ; whh.T] in [i,f,o,g] order, bf16
        self.packed_b = []      # (bih + bhh) in [i,f,o,g] order, f32, (1, 4H)
        for l in range(layers):
            in_dim = input_size if l == 0 else H
            in_dim_pad = self.in_pad if l == 0 else H
            key, k1, k2, k3, k4 = jax.random.split(key, 5)
            wih = jax.random.uniform(k1, (4 * H, in_dim), jnp.float32, -bound, bound)
            whh = jax.random.uniform(k2, (4 * H, H), jnp.float32, -bound, bound)
            wih = wih.astype(jnp.bfloat16).astype(jnp.float32)
            whh = whh.astype(jnp.bfloat16).astype(jnp.float32)
            bih = jax.random.uniform(k3, (4 * H,), jnp.float32, -bound, bound)
            bhh = jax.random.uniform(k4, (4 * H,), jnp.float32, -bound, bound)
            self.raw_params.append((wih, whh, bih, bhh))

            wih_t = wih.T                                       # (in_dim, 4H)
            if in_dim_pad > in_dim:
                wih_t = jnp.pad(wih_t, ((0, in_dim_pad - in_dim), (0, 0)))
            packed = jnp.concatenate([wih_t, whh.T], axis=0)    # (in_pad_l+H, 4H)
            self.packed_w.append(_reorder_ifog(packed).astype(jnp.bfloat16))
            self.packed_b.append(_reorder_ifog(bih + bhh).reshape(1, -1))

        key, k5, k6 = jax.random.split(key, 3)
        w_out = jax.random.uniform(k5, (self.vocab, H), jnp.float32, -bound, bound)
        w_out = w_out.astype(jnp.bfloat16).astype(jnp.float32)
        b_out = jax.random.uniform(k6, (self.vocab,), jnp.float32, -bound, bound)
        self.raw_out = (w_out, b_out)

        pad = self.vocab_pad - self.vocab
        self.w_out_t = jnp.pad(w_out.T, ((0, 0), (0, pad))).astype(jnp.bfloat16)
        if pad > 0:
            # padded logit lanes carry -1e30 (added in f32) so they never
            # contribute to the log-softmax.
            b_out_pad = jnp.concatenate(
                [b_out, jnp.full((pad,), -1e30, jnp.float32)])
        else:
            b_out_pad = b_out
        self.b_out = b_out_pad.reshape(1, -1)                    # (1, V_pad) f32

    def init_hidden(self):
        return (jnp.zeros((self.layers, 1, self.hidden_size), jnp.float32),
                jnp.zeros((self.layers, 1, self.hidden_size), jnp.float32))

    def _run(self, x_seq_pad, h0, c0):
        L, H = self.layers, self.hidden_size
        return _decoder_forward(
            x_seq_pad,
            h0.reshape(L, H).astype(jnp.float32),
            c0.reshape(L, H).astype(jnp.float32),
            tuple(self.packed_w), tuple(self.packed_b),
            self.w_out_t, self.b_out,
            layers=L, hidden=H, in_pad=self.in_pad, vocab_pad=self.vocab_pad)

    def __call__(self, inp, hidden):
        """Single-step forward: matches the PyTorch module's forward()."""
        L, H = self.layers, self.hidden_size
        h0, c0 = hidden                                          # (L, 1, H) each
        x = inp.reshape(1, 1, -1).astype(jnp.float32)            # input.view(1,1,-1)
        x = jnp.pad(x, ((0, 0), (0, 0), (0, self.in_pad - self.input_size)))
        y_pad, h_n, c_n = self._run(x, h0, c0)
        y = y_pad[:, :, :self.vocab].reshape(1, 1, self.vocab)
        return y, (h_n.reshape(L, 1, H), c_n.reshape(L, 1, H))

    def decode_sequence(self, inputs, hidden):
        """T steps in ONE kernel launch (grid-lifted loop, teacher-forced)."""
        L, H = self.layers, self.hidden_size
        T = inputs.shape[0]
        h0, c0 = hidden
        x = inputs.reshape(T, 1, -1).astype(jnp.float32)
        x = jnp.pad(x, ((0, 0), (0, 0), (0, self.in_pad - self.input_size)))
        y_pad, h_n, c_n = self._run(x, h0, c0)
        y = y_pad[:, :, :self.vocab]                             # (T, 1, vocab)
        return y, (h_n.reshape(L, 1, H), c_n.reshape(L, 1, H))


# ---------------------------- pure-JAX reference ----------------------------

def _reference_step(model, inp, hidden):
    """Straight transcription of the PyTorch math (f32, same weight values)."""
    h0, c0 = hidden
    H = model.hidden_size
    x = inp.reshape(1, -1).astype(jnp.float32)
    hs, cs = [], []
    for l in range(model.layers):
        wih, whh, bih, bhh = model.raw_params[l]
        gates = x @ wih.T + h0[l] @ whh.T + bih + bhh
        i = jax.nn.sigmoid(gates[:, :H])
        f = jax.nn.sigmoid(gates[:, H:2 * H])
        g = jnp.tanh(gates[:, 2 * H:3 * H])
        o = jax.nn.sigmoid(gates[:, 3 * H:])
        c = f * c0[l] + i * g
        h = o * jnp.tanh(c)
        hs.append(h); cs.append(c); x = h
    w_out, b_out = model.raw_out
    logits = x @ w_out.T + b_out
    y = jax.nn.log_softmax(logits, axis=-1)
    return y.reshape(1, 1, -1), (jnp.stack(hs, 0), jnp.stack(cs, 0))


if __name__ == "__main__":
    input_size, hidden_size, layers = 64, 128, 2

    key = jax.random.PRNGKey(0)
    kmodel, kx, kh, kc, kseq = jax.random.split(key, 5)

    model = DecoderRNNPallas(input_size, hidden_size, layers, key=kmodel)

    x = jax.random.normal(kx, (input_size,), jnp.float32)
    h0 = jax.random.normal(kh, (layers, 1, hidden_size), jnp.float32)
    c0 = jax.random.normal(kc, (layers, 1, hidden_size), jnp.float32)

    # ---- single step (the PyTorch module's forward semantics) ----
    y, (h_n, c_n) = model(x, (h0, c0))
    jax.block_until_ready((y, h_n, c_n))

    y_ref, (h_ref, c_ref) = _reference_step(model, x, (h0, c0))
    # tolerance relaxed vs. the all-f32 version: activations are cast to bf16
    # for the MXU matmuls (weights are identical bf16 values in both paths).
    np.testing.assert_allclose(np.asarray(y), np.asarray(y_ref), atol=2e-2, rtol=2e-2)
    np.testing.assert_allclose(np.asarray(h_n), np.asarray(h_ref), atol=2e-2, rtol=2e-2)
    np.testing.assert_allclose(np.asarray(c_n), np.asarray(c_ref), atol=2e-2, rtol=2e-2)
    assert y.shape == (1, 1, input_size)
    assert h_n.shape == (layers, 1, hidden_size)
    assert c_n.shape == (layers, 1, hidden_size)

    # ---- T tokens in a single launch (grid-lifted decode loop) ----
    T = 8
    xs = jax.random.normal(kseq, (T, input_size), jnp.float32)
    ys, (h_T, c_T) = model.decode_sequence(xs, (h0, c0))
    jax.block_until_ready((ys, h_T, c_T))

    hid = (h0, c0)
    ys_ref = []
    for t in range(T):
        yt, hid = _reference_step(model, xs[t], hid)
        ys_ref.append(yt.reshape(1, -1))
    ys_ref = jnp.stack(ys_ref, 0)                                # (T, 1, vocab)
    np.testing.assert_allclose(np.asarray(ys), np.asarray(ys_ref), atol=5e-2, rtol=5e-2)
    np.testing.assert_allclose(np.asarray(h_T), np.asarray(hid[0]), atol=5e-2, rtol=5e-2)
    np.testing.assert_allclose(np.asarray(c_T), np.asarray(hid[1]), atol=5e-2, rtol=5e-2)

    print("KERNEL_OK")
</pallas_src>

<mosaic_0001>
module attributes {stable_mosaic.version = 11 : i64} {
  func.func @kernel(%arg0: i32, %arg1: memref<1x1x128xf32, #tpu.memory_space<vmem>>, %arg2: memref<2x128xf32, #tpu.memory_space<vmem>>, %arg3: memref<2x128xf32, #tpu.memory_space<vmem>>, %arg4: memref<256x512xbf16, #tpu.memory_space<vmem>>, %arg5: memref<1x512xf32, #tpu.memory_space<vmem>>, %arg6: memref<256x512xbf16, #tpu.memory_space<vmem>>, %arg7: memref<1x512xf32, #tpu.memory_space<vmem>>, %arg8: memref<128x128xbf16, #tpu.memory_space<vmem>>, %arg9: memref<1x128xf32, #tpu.memory_space<vmem>>, %arg10: memref<1x1x128xf32, #tpu.memory_space<vmem>>, %arg11: memref<2x128xf32, #tpu.memory_space<vmem>>, %arg12: memref<2x128xf32, #tpu.memory_space<vmem>>, %arg13: memref<2x128xf32, #tpu.memory_space<vmem>>, %arg14: memref<2x128xf32, #tpu.memory_space<vmem>>) attributes {dimension_semantics = [#tpu.dimension_semantics<arbitrary>], iteration_bounds = array<i64: 1>, scalar_prefetch = 0 : i64, scratch_operands = 2 : i64, tpu.core_type = #tpu.core_type<tc>, window_params = [{transform_indices = @transform_0, window_bounds = array<i64: 1, 1, 128>}, {pipeline_mode = #tpu.pipeline_mode<synchronous>, transform_indices = @transform_1, window_bounds = array<i64: 2, 128>}, {pipeline_mode = #tpu.pipeline_mode<synchronous>, transform_indices = @transform_2, window_bounds = array<i64: 2, 128>}, {pipeline_mode = #tpu.pipeline_mode<synchronous>, transform_indices = @transform_3, window_bounds = array<i64: 256, 512>}, {pipeline_mode = #tpu.pipeline_mode<synchronous>, transform_indices = @transform_4, window_bounds = array<i64: 1, 512>}, {pipeline_mode = #tpu.pipeline_mode<synchronous>, transform_indices = @transform_5, window_bounds = array<i64: 256, 512>}, {pipeline_mode = #tpu.pipeline_mode<synchronous>, transform_indices = @transform_6, window_bounds = array<i64: 1, 512>}, {pipeline_mode = #tpu.pipeline_mode<synchronous>, transform_indices = @transform_7, window_bounds = array<i64: 128, 128>}, {pipeline_mode = #tpu.pipeline_mode<synchronous>, transform_indices = @transform_8, window_bounds = array<i64: 1, 128>}, {transform_indices = @transform_9, window_bounds = array<i64: 1, 1, 128>}, {pipeline_mode = #tpu.pipeline_mode<synchronous>, transform_indices = @transform_10, window_bounds = array<i64: 2, 128>}, {pipeline_mode = #tpu.pipeline_mode<synchronous>, transform_indices = @transform_11, window_bounds = array<i64: 2, 128>}]} {
    %c0_i32 = arith.constant 0 : i32
    %0 = arith.cmpi eq, %arg0, %c0_i32 : i32
    %1 = arith.extui %0 : i1 to i32
    %c0_i32_0 = arith.constant 0 : i32
    %2 = arith.cmpi ne, %1, %c0_i32_0 : i32
    scf.if %2 {
      %c0_41 = arith.constant 0 : index
      %c0_42 = arith.constant 0 : index
      %81 = vector.load %arg2[%c0_41, %c0_42] : memref<2x128xf32, #tpu.memory_space<vmem>>, vector<2x128xf32>
      %c0_43 = arith.constant 0 : index
      %c0_44 = arith.constant 0 : index
      %82 = vector.load %arg13[%c0_43, %c0_44] : memref<2x128xf32, #tpu.memory_space<vmem>>, vector<2x128xf32>
      tpu.vector_store %arg13[%c0_43, %c0_44], %81 {strides = array<i32>} : memref<2x128xf32, #tpu.memory_space<vmem>>, vector<2x128xf32>,
      %c0_45 = arith.constant 0 : index
      %c0_46 = arith.constant 0 : index
      %83 = vector.load %arg3[%c0_45, %c0_46] : memref<2x128xf32, #tpu.memory_space<vmem>>, vector<2x128xf32>
      %c0_47 = arith.constant 0 : index
      %c0_48 = arith.constant 0 : index
      %84 = vector.load %arg14[%c0_47, %c0_48] : memref<2x128xf32, #tpu.memory_space<vmem>>, vector<2x128xf32>
      tpu.vector_store %arg14[%c0_47, %c0_48], %83 {strides = array<i32>} : memref<2x128xf32, #tpu.memory_space<vmem>>, vector<2x128xf32>,
    } else {
    }
    %c0 = arith.constant 0 : index
    %c0_1 = arith.constant 0 : index
    %c0_2 = arith.constant 0 : index
    %3 = vector.load %arg1[%c0, %c0_1, %c0_2] : memref<1x1x128xf32, #tpu.memory_space<vmem>>, vector<1x1x128xf32>
    %4 = vector.shape_cast %3 : vector<1x1x128xf32> to vector<1x128xf32>
    %c0_3 = arith.constant 0 : index
    %c0_4 = arith.constant 0 : index
    %5 = vector.load %arg13[%c0_3, %c0_4] : memref<2x128xf32, #tpu.memory_space<vmem>>, vector<1x128xf32>
    %c0_5 = arith.constant 0 : index
    %c0_6 = arith.constant 0 : index
    %6 = vector.load %arg14[%c0_5, %c0_6] : memref<2x128xf32, #tpu.memory_space<vmem>>, vector<1x128xf32>
    %7 = arith.truncf %4 : vector<1x128xf32> to vector<1x128xbf16>
    %8 = arith.truncf %5 : vector<1x128xf32> to vector<1x128xbf16>
    %9 = tpu.concatenate %7, %8 in 1 : vector<1x128xbf16>, vector<1x128xbf16> -> vector<1x256xbf16>
    %c0_7 = arith.constant 0 : index
    %c0_8 = arith.constant 0 : index
    %10 = vector.load %arg4[%c0_7, %c0_8] : memref<256x512xbf16, #tpu.memory_space<vmem>>, vector<256x512xbf16>
    %cst = arith.constant dense<0.000000e+00> : vector<1x512xf32>
    %11 = tpu.matmul %9, %10, %cst {dimension_numbers = #tpu.dot_dimension_numbers<[1], [0], [0], [1], [0, 0, 1, 1], [], []>} : vector<1x256xbf16>, vector<256x512xbf16>, vector<1x512xf32> -> vector<1x512xf32>
    %c0_9 = arith.constant 0 : index
    %c0_10 = arith.constant 0 : index
    %12 = vector.load %arg5[%c0_9, %c0_10] : memref<1x512xf32, #tpu.memory_space<vmem>>, vector<1x512xf32>
    %13 = arith.addf %11, %12 : vector<1x512xf32>
    %14 = vector.extract_strided_slice %13 {offsets = [0, 0], sizes = [1, 384], strides = [1, 1]} : vector<1x512xf32> to vector<1x384xf32>
    %15 = arith.negf %14 : vector<1x384xf32>
    %16 = math.exp %15 : vector<1x384xf32>
    %cst_11 = arith.constant 1.000000e+00 : f32
    %17 = vector.broadcast %cst_11 : f32 to vector<1x384xf32>
    %18 = arith.addf %17, %16 : vector<1x384xf32>
    %19 = arith.divf %17, %18 : vector<1x384xf32>
    %20 = vector.extract_strided_slice %19 {offsets = [0, 0], sizes = [1, 128], strides = [1, 1]} : vector<1x384xf32> to vector<1x128xf32>
    %21 = vector.extract_strided_slice %19 {offsets = [0, 128], sizes = [1, 128], strides = [1, 1]} : vector<1x384xf32> to vector<1x128xf32>
    %22 = vector.extract_strided_slice %19 {offsets = [0, 256], sizes = [1, 128], strides = [1, 1]} : vector<1x384xf32> to vector<1x128xf32>
    %23 = vector.extract_strided_slice %13 {offsets = [0, 384], sizes = [1, 128], strides = [1, 1]} : vector<1x512xf32> to vector<1x128xf32>
    %24 = math.tanh %23 : vector<1x128xf32>
    %25 = arith.mulf %21, %6 : vector<1x128xf32>
    %26 = arith.mulf %20, %24 : vector<1x128xf32>
    %27 = arith.addf %25, %26 : vector<1x128xf32>
    %28 = math.tanh %27 : vector<1x128xf32>
    %29 = arith.mulf %22, %28 : vector<1x128xf32>
    %c0_12 = arith.constant 0 : index
    %c0_13 = arith.constant 0 : index
    %30 = vector.load %arg13[%c0_12, %c0_13] : memref<2x128xf32, #tpu.memory_space<vmem>>, vector<1x128xf32>
    tpu.vector_store %arg13[%c0_12, %c0_13], %29 {strides = array<i32>} : memref<2x128xf32, #tpu.memory_space<vmem>>, vector<1x128xf32>,
    %c0_14 = arith.constant 0 : index
    %c0_15 = arith.constant 0 : index
    %31 = vector.load %arg14[%c0_14, %c0_15] : memref<2x128xf32, #tpu.memory_space<vmem>>, vector<1x128xf32>
    tpu.vector_store %arg14[%c0_14, %c0_15], %27 {strides = array<i32>} : memref<2x128xf32, #tpu.memory_space<vmem>>, vector<1x128xf32>,
    %c1 = arith.constant 1 : index
    %c0_16 = arith.constant 0 : index
    %32 = vector.load %arg13[%c1, %c0_16] : memref<2x128xf32, #tpu.memory_space<vmem>>, vector<1x128xf32>
    %c1_17 = arith.constant 1 : index
    %c0_18 = arith.constant 0 : index
    %33 = vector.load %arg14[%c1_17, %c0_18] : memref<2x128xf32, #tpu.memory_space<vmem>>, vector<1x128xf32>
    %34 = arith.truncf %29 : vector<1x128xf32> to vector<1x128xbf16>
    %35 = arith.truncf %32 : vector<1x128xf32> to vector<1x128xbf16>
    %36 = tpu.concatenate %34, %35 in 1 : vector<1x128xbf16>, vector<1x128xbf16> -> vector<1x256xbf16>
    %c0_19 = arith.constant 0 : index
    %c0_20 = arith.constant 0 : index
    %37 = vector.load %arg6[%c0_19, %c0_20] : memref<256x512xbf16, #tpu.memory_space<vmem>>, vector<256x512xbf16>
    %cst_21 = arith.constant dense<0.000000e+00> : vector<1x512xf32>
    %38 = tpu.matmul %36, %37, %cst_21 {dimension_numbers = #tpu.dot_dimension_numbers<[1], [0], [0], [1], [0, 0, 1, 1], [], []>} : vector<1x256xbf16>, vector<256x512xbf16>, vector<1x512xf32> -> vector<1x512xf32>
    %c0_22 = arith.constant 0 : index
    %c0_23 = arith.constant 0 : index
    %39 = vector.load %arg7[%c0_22, %c0_23] : memref<1x512xf32, #tpu.memory_space<vmem>>, vector<1x512xf32>
    %40 = arith.addf %38, %39 : vector<1x512xf32>
    %41 = vector.extract_strided_slice %40 {offsets = [0, 0], sizes = [1, 384], strides = [1, 1]} : vector<1x512xf32> to vector<1x384xf32>
    %42 = arith.negf %41 : vector<1x384xf32>
    %43 = math.exp %42 : vector<1x384xf32>
    %cst_24 = arith.constant 1.000000e+00 : f32
    %44 = vector.broadcast %cst_24 : f32 to vector<1x384xf32>
    %45 = arith.addf %44, %43 : vector<1x384xf32>
    %46 = arith.divf %44, %45 : vector<1x384xf32>
    %47 = vector.extract_strided_slice %46 {offsets = [0, 0], sizes = [1, 128], strides = [1, 1]} : vector<1x384xf32> to vector<1x128xf32>
    %48 = vector.extract_strided_slice %46 {offsets = [0, 128], sizes = [1, 128], strides = [1, 1]} : vector<1x384xf32> to vector<1x128xf32>
    %49 = vector.extract_strided_slice %46 {offsets = [0, 256], sizes = [1, 128], strides = [1, 1]} : vector<1x384xf32> to vector<1x128xf32>
    %50 = vector.extract_strided_slice %40 {offsets = [0, 384], sizes = [1, 128], strides = [1, 1]} : vector<1x512xf32> to vector<1x128xf32>
    %51 = math.tanh %50 : vector<1x128xf32>
    %52 = arith.mulf %48, %33 : vector<1x128xf32>
    %53 = arith.mulf %47, %51 : vector<1x128xf32>
    %54 = arith.addf %52, %53 : vector<1x128xf32>
    %55 = math.tanh %54 : vector<1x128xf32>
    %56 = arith.mulf %49, %55 : vector<1x128xf32>
    %c1_25 = arith.constant 1 : index
    %c0_26 = arith.constant 0 : index
    %57 = vector.load %arg13[%c1_25, %c0_26] : memref<2x128xf32, #tpu.memory_space<vmem>>, vector<1x128xf32>
    tpu.vector_store %arg13[%c1_25, %c0_26], %56 {strides = array<i32>} : memref<2x128xf32, #tpu.memory_space<vmem>>, vector<1x128xf32>,
    %c1_27 = arith.constant 1 : index
    %c0_28 = arith.constant 0 : index
    %58 = vector.load %arg14[%c1_27, %c0_28] : memref<2x128xf32, #tpu.memory_space<vmem>>, vector<1x128xf32>
    tpu.vector_store %arg14[%c1_27, %c0_28], %54 {strides = array<i32>} : memref<2x128xf32, #tpu.memory_space<vmem>>, vector<1x128xf32>,
    %59 = arith.truncf %56 : vector<1x128xf32> to vector<1x128xbf16>
    %c0_29 = arith.constant 0 : index
    %c0_30 = arith.constant 0 : index
    %60 = vector.load %arg8[%c0_29, %c0_30] : memref<128x128xbf16, #tpu.memory_space<vmem>>, vector<128x128xbf16>
    %cst_31 = arith.constant dense<0.000000e+00> : vector<1x128xf32>
    %61 = tpu.matmul %59, %60, %cst_31 {dimension_numbers = #tpu.dot_dimension_numbers<[1], [0], [0], [1], [0, 0, 1, 1], [], []>} : vector<1x128xbf16>, vector<128x128xbf16>, vector<1x128xf32> -> vector<1x128xf32>
    %c0_32 = arith.constant 0 : index
    %c0_33 = arith.constant 0 : index
    %62 = vector.load %arg9[%c0_32, %c0_33] : memref<1x128xf32, #tpu.memory_space<vmem>>, vector<1x128xf32>
    %63 = arith.addf %61, %62 : vector<1x128xf32>
    %cst_34 = arith.constant dense<0xFF800000> : vector<1xf32>
    %64 = vector.multi_reduction <maximumf>, %63, %cst_34 [1] : vector<1x128xf32> to vector<1xf32>
    %65 = vector.shape_cast %64 : vector<1xf32> to vector<1x1xf32>
    %66 = vector.broadcast %65 : vector<1x1xf32> to vector<1x128xf32>
    %67 = arith.subf %63, %66 : vector<1x128xf32>
    %68 = math.exp %67 : vector<1x128xf32>
    %cst_35 = arith.constant dense<0.000000e+00> : vector<1xf32>
    %69 = vector.multi_reduction <add>, %68, %cst_35 [1] : vector<1x128xf32> to vector<1xf32>
    %70 = vector.shape_cast %69 : vector<1xf32> to vector<1x1xf32>
    %71 = math.log %70 : vector<1x1xf32>
    %72 = arith.addf %71, %65 : vector<1x1xf32>
    %73 = vector.broadcast %72 : vector<1x1xf32> to vector<1x128xf32>
    %74 = arith.subf %63, %73 : vector<1x128xf32>
    %c0_36 = arith.constant 0 : index
    %c0_37 = arith.constant 0 : index
    %c0_38 = arith.constant 0 : index
    %75 = vector.load %arg10[%c0_36, %c0_37, %c0_38] : memref<1x1x128xf32, #tpu.memory_space<vmem>>, vector<1x1x128xf32>
    %76 = vector.shape_cast %75 : vector<1x1x128xf32> to vector<1x128xf32>
    %77 = vector.shape_cast %74 : vector<1x128xf32> to vector<1x1x128xf32>
    tpu.vector_store %arg10[%c0_36, %c0_37, %c0_38], %77 {strides = array<i32>} : memref<1x1x128xf32, #tpu.memory_space<vmem>>, vector<1x1x128xf32>,
    %c0_i32_39 = arith.constant 0 : i32
    %78 = arith.cmpi eq, %arg0, %c0_i32_39 : i32
    %79 = arith.extui %78 : i1 to i32
    %c0_i32_40 = arith.constant 0 : i32
    %80 = arith.cmpi ne, %79, %c0_i32_40 : i32
    scf.if %80 {
      %c0_41 = arith.constant 0 : index
      %c0_42 = arith.constant 0 : index
      %81 = vector.load %arg13[%c0_41, %c0_42] : memref<2x128xf32, #tpu.memory_space<vmem>>, vector<2x128xf32>
      %c0_43 = arith.constant 0 : index
      %c0_44 = arith.constant 0 : index
      %82 = vector.load %arg11[%c0_43, %c0_44] : memref<2x128xf32, #tpu.memory_space<vmem>>, vector<2x128xf32>
      tpu.vector_store %arg11[%c0_43, %c0_44], %81 {strides = array<i32>} : memref<2x128xf32, #tpu.memory_space<vmem>>, vector<2x128xf32>,
      %c0_45 = arith.constant 0 : index
      %c0_46 = arith.constant 0 : index
      %83 = vector.load %arg14[%c0_45, %c0_46] : memref<2x128xf32, #tpu.memory_space<vmem>>, vector<2x128xf32>
      %c0_47 = arith.constant 0 : index
      %c0_48 = arith.constant 0 : index
      %84 = vector.load %arg12[%c0_47, %c0_48] : memref<2x128xf32, #tpu.memory_space<vmem>>, vector<2x128xf32>
      tpu.vector_store %arg12[%c0_47, %c0_48], %83 {strides = array<i32>} : memref<2x128xf32, #tpu.memory_space<vmem>>, vector<2x128xf32>,
    } else {
    }
    return
  }
  func.func @transform_0(%arg0: i32) -> (i32, i32, i32) {
    %c0_i32 = arith.constant 0 : i32
    %c0_i32_0 = arith.constant 0 : i32
    %c0_i32_1 = arith.constant 0 : i32
    return %arg0, %c0_i32, %c0_i32_0 : i32, i32, i32
  }
  func.func @transform_1(%arg0: i32) -> (i32, i32) {
    %c0_i32 = arith.constant 0 : i32
    %c0_i32_0 = arith.constant 0 : i32
    %c0_i32_1 = arith.constant 0 : i32
    return %c0_i32, %c0_i32_0 : i32, i32
  }
  func.func @transform_2(%arg0: i32) -> (i32, i32) {
    %c0_i32 = arith.constant 0 : i32
    %c0_i32_0 = arith.constant 0 : i32
    %c0_i32_1 = arith.constant 0 : i32
    return %c0_i32, %c0_i32_0 : i32, i32
  }
  func.func @transform_3(%arg0: i32) -> (i32, i32) {
    %c0_i32 = arith.constant 0 : i32
    %c0_i32_0 = arith.constant 0 : i32
    %c0_i32_1 = arith.constant 0 : i32
    return %c0_i32, %c0_i32_0 : i32, i32
  }
  func.func @transform_4(%arg0: i32) -> (i32, i32) {
    %c0_i32 = arith.constant 0 : i32
    %c0_i32_0 = arith.constant 0 : i32
    %c0_i32_1 = arith.constant 0 : i32
    return %c0_i32, %c0_i32_0 : i32, i32
  }
  func.func @transform_5(%arg0: i32) -> (i32, i32) {
    %c0_i32 = arith.constant 0 : i32
    %c0_i32_0 = arith.constant 0 : i32
    %c0_i32_1 = arith.constant 0 : i32
    return %c0_i32, %c0_i32_0 : i32, i32
  }
  func.func @transform_6(%arg0: i32) -> (i32, i32) {
    %c0_i32 = arith.constant 0 : i32
    %c0_i32_0 = arith.constant 0 : i32
    %c0_i32_1 = arith.constant 0 : i32
    return %c0_i32, %c0_i32_0 : i32, i32
  }
  func.func @transform_7(%arg0: i32) -> (i32, i32) {
    %c0_i32 = arith.constant 0 : i32
    %c0_i32_0 = arith.constant 0 : i32
    %c0_i32_1 = arith.constant 0 : i32
    return %c0_i32, %c0_i32_0 : i32, i32
  }
  func.func @transform_8(%arg0: i32) -> (i32, i32) {
    %c0_i32 = arith.constant 0 : i32
    %c0_i32_0 = arith.constant 0 : i32
    %c0_i32_1 = arith.constant 0 : i32
    return %c0_i32, %c0_i32_0 : i32, i32
  }
  func.func @transform_9(%arg0: i32) -> (i32, i32, i32) {
    %c0_i32 = arith.constant 0 : i32
    %c0_i32_0 = arith.constant 0 : i32
    %c0_i32_1 = arith.constant 0 : i32
    return %arg0, %c0_i32, %c0_i32_0 : i32, i32, i32
  }
  func.func @transform_10(%arg0: i32) -> (i32, i32) {
    %c0_i32 = arith.constant 0 : i32
    %c0_i32_0 = arith.constant 0 : i32
    %c0_i32_1 = arith.constant 0 : i32
    return %c0_i32, %c0_i32_0 : i32, i32
  }
  func.func @transform_11(%arg0: i32) -> (i32, i32) {
    %c0_i32 = arith.constant 0 : i32
    %c0_i32_0 = arith.constant 0 : i32
    %c0_i32_1 = arith.constant 0 : i32
    return %c0_i32, %c0_i32_0 : i32, i32
  }
}

</mosaic_0001>

<llo_original>
// kernel: _decoder_forward.1
$region0: #{_decoder_forward.1}
  #allocation0 [shape = 'u32[]', space=smem, size = 0x4, offset = 0x4, fixed_abs, tag = 'smem constant byte address 0x4 - core index']
  #allocation1 [shape = 'u32[144,128]{1,0:T(1,128)}', space=vmem, size = 0x12000, scoped, tag = 'internal scratch']
  #allocation2 [shape = 'f32[2,128]{1,0:T(2,128)}', space=vmem, size = 0x400, scoped, tag = 'scratch operand']
  #allocation3 [shape = 'f32[2,128]{1,0:T(2,128)}', space=vmem, size = 0x400, scoped, tag = 'scratch operand']
  %s0 = inlined_call_operand.hbm [shape: f32[1,1,128], index: 0, kind: input, shape index: {}]
  %s1 = inlined_call_operand.vmem [shape: f32[2,128], index: 1, kind: input, shape index: {}]
  %s2 = inlined_call_operand.hbm [shape: f32[2,128], index: 2, kind: input, shape index: {}]
  %s3 = inlined_call_operand.hbm [shape: bf16[256,512], index: 3, kind: input, shape index: {}]
  %s4 = inlined_call_operand.vmem [shape: f32[1,512], index: 4, kind: input, shape index: {}]
  %s5 = inlined_call_operand.hbm [shape: bf16[256,512], index: 5, kind: input, shape index: {}]
  %s6 = inlined_call_operand.vmem [shape: f32[1,512], index: 6, kind: input, shape index: {}]
  %s7 = inlined_call_operand.hbm [shape: bf16[128,128], index: 7, kind: input, shape index: {}]
  %s8 = inlined_call_operand.vmem [shape: f32[1,128], index: 8, kind: input, shape index: {}]
  %s9 = inlined_call_operand.hbm [shape: f32[1,1,128], index: 9, kind: output, shape index: {0}]
  %s10 = inlined_call_operand.hbm [shape: f32[2,128], index: 10, kind: output, shape index: {1}]
  %s11 = inlined_call_operand.hbm [shape: f32[2,128], index: 11, kind: output, shape index: {2}]
  %12 = xla_tuple %s9, %s10, %s11
  %s13 = sld [smem:[#allocation0]]
  $region90: #{_decoder_forward.1} parent=0
    _
  %s15 = ssub.s32 1, %s13
  %s16 = scalar_select 0, %s15, %s13
  $region1: #{_decoder_forward.1} parent=0
    #allocation4 [shape = 'u8[512]{0}', space=vmem, size = 0x400, scoped, tag = 'input window, operand 0, single buffered']
    #allocation5 [shape = 's32[1]{0}', space=sflag, size = 0x4, scoped, tag = 'scoped memory for _decoder_forward.1']
    #allocation6 [shape = 's32[1]{0}', space=sflag, size = 0x4, scoped, tag = 'scoped memory for _decoder_forward.1']
    #allocation7 [shape = 'u8[1024]{0}', space=vmem, size = 0x400, scoped, tag = 'input window, operand 2, single buffered']
    #allocation8 [shape = 's32[1]{0}', space=sflag, size = 0x4, scoped, tag = 'scoped memory for _decoder_forward.1']
    #allocation9 [shape = 'u8[262144]{0}', space=vmem, size = 0x40000, scoped, tag = 'input window, operand 3, single buffered']
    #allocation10 [shape = 'u8[262144]{0}', space=vmem, size = 0x40000, scoped, tag = 'input window, operand 5, single buffered']
    #allocation11 [shape = 's32[1]{0}', space=sflag, size = 0x4, scoped, tag = 'scoped memory for _decoder_forward.1']
    #allocation12 [shape = 'u8[32768]{0}', space=vmem, size = 0x8000, scoped, tag = 'input window, operand 7, single buffered']
    #allocation13 [shape = 'u8[512]{0}', space=vmem, size = 0x400, scoped, tag = 'output window, operand 0, single buffered']
    #allocation14 [shape = 'u8[1024]{0}', space=vmem, size = 0x400, scoped, tag = 'output window, operand 1, single buffered']
    #allocation15 [shape = 's32[1]{0}', space=sflag, size = 0x4, scoped, tag = 'scoped memory for _decoder_forward.1']
    #allocation16 [shape = 'u8[1024]{0}', space=vmem, size = 0x400, scoped, tag = 'output window, operand 2, single buffered']
    %17 = vsyncpa [#allocation5], 0
    %18 = vsyncpa [#allocation8], 0
    %19 = vsyncpa [#allocation11], 0
    %20 = vsyncpa [#allocation6], 0
    %21 = vsyncpa [#allocation15], 0
    // Predicated region
    $region2: #{_decoder_forward.1} parent=1 // pred_check
      _
    $region3: #{_decoder_forward.1} parent=1 // pred_check_branch
      %23 = sbr.rel (0) target = $region5
    $region4: #{_decoder_forward.1} parent=1 // pred_region
      %s25 = ssub.s32 16, 16
      %26 = vsyncadd [#allocation5], %s25
      %s28 = sshll.u32 [#allocation4], 4
      %s29 = int_to_ptr.vmem [resolvable:$true] %s28
      %31 = dma.hbm_to_vmem [thread:$0]  %s0, 16, %s29, [#allocation5]
    $region5: #{_decoder_forward.1} parent=1 // pred_fallthru
      _
    // Predicated region
    $region6: #{_decoder_forward.1} parent=1 // pred_check
      _
    $region7: #{_decoder_forward.1} parent=1 // pred_check_branch
      %33 = sbr.rel (0) target = $region9
    $region8: #{_decoder_forward.1} parent=1 // pred_region
      _
    $region9: #{_decoder_forward.1} parent=1 // pred_fallthru
      _
    // Predicated region
    $region10: #{_decoder_forward.1} parent=1 // pred_check
      _
    $region11: #{_decoder_forward.1} parent=1 // pred_check_branch
      %35 = sbr.rel (0) target = $region13
    $region12: #{_decoder_forward.1} parent=1 // pred_region
      %s37 = ssub.s32 32, 32
      %38 = vsyncadd [#allocation8], %s37
      %s40 = sshll.u32 [#allocation7], 4
      %s41 = int_to_ptr.vmem [resolvable:$true] %s40
      %43 = dma.hbm_to_vmem [thread:$0]  %s2, 32, %s41, [#allocation8]
    $region13: #{_decoder_forward.1} parent=1 // pred_fallthru
      _
    // Predicated region
    $region14: #{_decoder_forward.1} parent=1 // pred_check
      _
    $region15: #{_decoder_forward.1} parent=1 // pred_check_branch
      %45 = sbr.rel (0) target = $region17
    $region16: #{_decoder_forward.1} parent=1 // pred_region
      %s47 = ssub.s32 8192, 8192
      %48 = vsyncadd [#allocation8], %s47
      %s49 = sshll.u32 [#allocation9], 4
      %s50 = int_to_ptr.vmem [resolvable:$true] %s49
      %55 = dma.hbm_to_vmem [thread:$0]  %s3, 8192, %s50, [#allocation8], 256, 256, 16
    $region17: #{_decoder_forward.1} parent=1 // pred_fallthru
      _
    // Predicated region
    $region18: #{_decoder_forward.1} parent=1 // pred_check
      _
    $region19: #{_decoder_forward.1} parent=1 // pred_check_branch
      %57 = sbr.rel (0) target = $region21
    $region20: #{_decoder_forward.1} parent=1 // pred_region
      _
    $region21: #{_decoder_forward.1} parent=1 // pred_fallthru
      _
    // Predicated region
    $region22: #{_decoder_forward.1} parent=1 // pred_check
      _
    $region23: #{_decoder_forward.1} parent=1 // pred_check_branch
      %59 = sbr.rel (0) target = $region25
    $region24: #{_decoder_forward.1} parent=1 // pred_region
      %s61 = ssub.s32 8192, 8192
      %62 = vsyncadd [#allocation11], %s61
      %s63 = sshll.u32 [#allocation10], 4
      %s64 = int_to_ptr.vmem [resolvable:$true] %s63
      %69 = dma.hbm_to_vmem [thread:$0]  %s5, 8192, %s64, [#allocation11], 256, 256, 16
    $region25: #{_decoder_forward.1} parent=1 // pred_fallthru
      _
    // Predicated region
    $region26: #{_decoder_forward.1} parent=1 // pred_check
      _
    $region27: #{_decoder_forward.1} parent=1 // pred_check_branch
      %71 = sbr.rel (0) target = $region29
    $region28: #{_decoder_forward.1} parent=1 // pred_region
      _
    $region29: #{_decoder_forward.1} parent=1 // pred_fallthru
      _
    // Predicated region
    $region30: #{_decoder_forward.1} parent=1 // pred_check
      _
    $region31: #{_decoder_forward.1} parent=1 // pred_check_branch
      %73 = sbr.rel (0) target = $region33
    $region32: #{_decoder_forward.1} parent=1 // pred_region
      %s75 = ssub.s32 1024, 1024
      %76 = vsyncadd [#allocation11], %s75
      %s77 = sshll.u32 [#allocation12], 4
      %s78 = int_to_ptr.vmem [resolvable:$true] %s77
      %83 = dma.hbm_to_vmem [thread:$0]  %s7, 1024, %s78, [#allocation11], 64, 64, 4
    $region33: #{_decoder_forward.1} parent=1 // pred_fallthru
      _
    // Predicated region
    $region34: #{_decoder_forward.1} parent=1 // pred_check
      _
    $region35: #{_decoder_forward.1} parent=1 // pred_check_branch
      %85 = sbr.rel (0) target = $region37
    $region36: #{_decoder_forward.1} parent=1 // pred_region
      _
    $region37: #{_decoder_forward.1} parent=1 // pred_fallthru
      _
    // Predicated region
    $region38: #{_decoder_forward.1} parent=1 // pred_check
      _
    $region39: #{_decoder_forward.1} parent=1 // pred_check_branch
      %87 = sbr.rel (0) target = $region41
    $region40: #{_decoder_forward.1} parent=1 // pred_region
      %88 = dma.done [#allocation5], 16
    $region41: #{_decoder_forward.1} parent=1 // pred_fallthru
      _
    // Predicated region
    $region42: #{_decoder_forward.1} parent=1 // pred_check
      _
    $region43: #{_decoder_forward.1} parent=1 // pred_check_branch
      %90 = sbr.rel (0) target = $region45
    $region44: #{_decoder_forward.1} parent=1 // pred_region
      %91 = dma.done [#allocation8], 32
    $region45: #{_decoder_forward.1} parent=1 // pred_fallthru
      _
    // Predicated region
    $region46: #{_decoder_forward.1} parent=1 // pred_check
      _
    $region47: #{_decoder_forward.1} parent=1 // pred_check_branch
      %93 = sbr.rel (0) target = $region49
    $region48: #{_decoder_forward.1} parent=1 // pred_region
      %94 = dma.done [#allocation8], 8192
    $region49: #{_decoder_forward.1} parent=1 // pred_fallthru
      _
    // Predicated region
    $region50: #{_decoder_forward.1} parent=1 // pred_check
      _
    $region51: #{_decoder_forward.1} parent=1 // pred_check_branch
      %96 = sbr.rel (0) target = $region53
    $region52: #{_decoder_forward.1} parent=1 // pred_region
      %97 = dma.done [#allocation11], 8192
    $region53: #{_decoder_forward.1} parent=1 // pred_fallthru
      _
    // Predicated region
    $region54: #{_decoder_forward.1} parent=1 // pred_check
      _
    $region55: #{_decoder_forward.1} parent=1 // pred_check_branch
      %99 = sbr.rel (0) target = $region57
    $region56: #{_decoder_forward.1} parent=1 // pred_region
      %100 = dma.done [#allocation11], 1024
    $region57: #{_decoder_forward.1} parent=1 // pred_fallthru
      _
    %p102 = scmp.eq.s32.totalorder 0, 0
    // Predicated region
    $region58: #{_decoder_forward.1} parent=1 // pred_check
      %p103 = pneg %p102
    $region59: #{_decoder_forward.1} parent=1 // pred_check_branch
      %105 = sbr.rel (%p103) target = $region61
    $region60: #{_decoder_forward.1} parent=1 // pred_region
      %v106 = vld [vmem:[%s1] sm:$0x3]
      %107 = vst [vmem:[#allocation2] sm:$0x3] %v106
      %v108 = vld [vmem:[#allocation7] sm:$0x3]
      %109 = vst [vmem:[#allocation3] sm:$0x3] %v108
    $region61: #{_decoder_forward.1} parent=1 // pred_fallthru
      _
    %v110 = vld [vmem:[#allocation4] sm:$0x1]
    %v111 = vld [vmem:[#allocation2] sm:$0x1]
    %v112 = vld [vmem:[#allocation3] sm:$0x1]
    %v113 = vpack.c.bf16 %v110, %v110
    %v114 = vpack.c.bf16 %v111, %v111
    %v115 = vld [vmem:[#allocation9] sm:$0xff]
    %v116 = vld [vmem:[#allocation9 + $0x8] sm:$0xff]
    %v117 = vld [vmem:[#allocation9 + $0x10] sm:$0xff]
    %v118 = vld [vmem:[#allocation9 + $0x18] sm:$0xff]
    %v119 = vld [vmem:[#allocation9 + $0x20] sm:$0xff]
    %v120 = vld [vmem:[#allocation9 + $0x28] sm:$0xff]
    %v121 = vld [vmem:[#allocation9 + $0x30] sm:$0xff]
    %v122 = vld [vmem:[#allocation9 + $0x38] sm:$0xff]
    %v123 = vld [vmem:[#allocation9 + $0x40] sm:$0xff]
    %v124 = vld [vmem:[#allocation9 + $0x48] sm:$0xff]
    %v125 = vld [vmem:[#allocation9 + $0x50] sm:$0xff]
    %v126 = vld [vmem:[#allocation9 + $0x58] sm:$0xff]
    %v127 = vld [vmem:[#allocation9 + $0x60] sm:$0xff]
    %v128 = vld [vmem:[#allocation9 + $0x68] sm:$0xff]
    %v129 = vld [vmem:[#allocation9 + $0x70] sm:$0xff]
    %v130 = vld [vmem:[#allocation9 + $0x78] sm:$0xff]
    %v131 = vld [vmem:[#allocation9 + $0x80] sm:$0xff]
    %v132 = vld [vmem:[#allocation9 + $0x88] sm:$0xff]
    %v133 = vld [vmem:[#allocation9 + $0x90] sm:$0xff]
    %v134 = vld [vmem:[#allocation9 + $0x98] sm:$0xff]
    %v135 = vld [vmem:[#allocation9 + $0xa0] sm:$0xff]
    %v136 = vld [vmem:[#allocation9 + $0xa8] sm:$0xff]
    %v137 = vld [vmem:[#allocation9 + $0xb0] sm:$0xff]
    %v138 = vld [vmem:[#allocation9 + $0xb8] sm:$0xff]
    %v139 = vld [vmem:[#allocation9 + $0xc0] sm:$0xff]
    %v140 = vld [vmem:[#allocation9 + $0xc8] sm:$0xff]
    %v141 = vld [vmem:[#allocation9 + $0xd0] sm:$0xff]
    %v142 = vld [vmem:[#allocation9 + $0xd8] sm:$0xff]
    %v143 = vld [vmem:[#allocation9 + $0xe0] sm:$0xff]
    %v144 = vld [vmem:[#allocation9 + $0xe8] sm:$0xff]
    %v145 = vld [vmem:[#allocation9 + $0xf0] sm:$0xff]
    %v146 = vld [vmem:[#allocation9 + $0xf8] sm:$0xff]
    %v147 = vld [vmem:[#allocation9 + $0x100] sm:$0xff]
    %v148 = vld [vmem:[#allocation9 + $0x108] sm:$0xff]
    %v149 = vld [vmem:[#allocation9 + $0x110] sm:$0xff]
    %v150 = vld [vmem:[#allocation9 + $0x118] sm:$0xff]
    %v151 = vld [vmem:[#allocation9 + $0x120] sm:$0xff]
    %v152 = vld [vmem:[#allocation9 + $0x128] sm:$0xff]
    %v153 = vld [vmem:[#allocation9 + $0x130] sm:$0xff]
    %v154 = vld [vmem:[#allocation9 + $0x138] sm:$0xff]
    %v155 = vld [vmem:[#allocation9 + $0x140] sm:$0xff]
    %v156 = vld [vmem:[#allocation9 + $0x148] sm:$0xff]
    %v157 = vld [vmem:[#allocation9 + $0x150] sm:$0xff]
    %v158 = vld [vmem:[#allocation9 + $0x158] sm:$0xff]
    %v159 = vld [vmem:[#allocation9 + $0x160] sm:$0xff]
    %v160 = vld [vmem:[#allocation9 + $0x168] sm:$0xff]
    %v161 = vld [vmem:[#allocation9 + $0x170] sm:$0xff]
    %v162 = vld [vmem:[#allocation9 + $0x178] sm:$0xff]
    %v163 = vld [vmem:[#allocation9 + $0x180] sm:$0xff]
    %v164 = vld [vmem:[#allocation9 + $0x188] sm:$0xff]
    %v165 = vld [vmem:[#allocation9 + $0x190] sm:$0xff]
    %v166 = vld [vmem:[#allocation9 + $0x198] sm:$0xff]
    %v167 = vld [vmem:[#allocation9 + $0x1a0] sm:$0xff]
    %v168 = vld [vmem:[#allocation9 + $0x1a8] sm:$0xff]
    %v169 = vld [vmem:[#allocation9 + $0x1b0] sm:$0xff]
    %v170 = vld [vmem:[#allocation9 + $0x1b8] sm:$0xff]
    %v171 = vld [vmem:[#allocation9 + $0x1c0] sm:$0xff]
    %v172 = vld [vmem:[#allocation9 + $0x1c8] sm:$0xff]
    %v173 = vld [vmem:[#allocation9 + $0x1d0] sm:$0xff]
    %v174 = vld [vmem:[#allocation9 + $0x1d8] sm:$0xff]
    %v175 = vld [vmem:[#allocation9 + $0x1e0] sm:$0xff]
    %v176 = vld [vmem:[#allocation9 + $0x1e8] sm:$0xff]
    %v177 = vld [vmem:[#allocation9 + $0x1f0] sm:$0xff]
    %v178 = vld [vmem:[#allocation9 + $0x1f8] sm:$0xff]
    %v179 = vld [vmem:[%s4] sm:$0xf]
    %v244 = vunpack.c.l.b16 %v115
    %v245 = vunpack.c.h.b16 %v115
    %v246 = vunpack.c.l.b16 %v116
    %v247 = vunpack.c.h.b16 %v116
    %v248 = vunpack.c.l.b16 %v117
    %v249 = vunpack.c.h.b16 %v117
    %v250 = vunpack.c.l.b16 %v118
    %v251 = vunpack.c.h.b16 %v118
    %v252 = vunpack.c.l.b16 %v119
    %v253 = vunpack.c.h.b16 %v119
    %v254 = vunpack.c.l.b16 %v120
    %v255 = vunpack.c.h.b16 %v120
    %v256 = vunpack.c.l.b16 %v121
    %v257 = vunpack.c.h.b16 %v121
    %v258 = vunpack.c.l.b16 %v122
    %v259 = vunpack.c.h.b16 %v122
    %v260 = vunpack.c.l.b16 %v123
    %v261 = vunpack.c.h.b16 %v123
    %v262 = vunpack.c.l.b16 %v124
    %v263 = vunpack.c.h.b16 %v124
    %v264 = vunpack.c.l.b16 %v125
    %v265 = vunpack.c.h.b16 %v125
    %v266 = vunpack.c.l.b16 %v126
    %v267 = vunpack.c.h.b16 %v126
    %v268 = vunpack.c.l.b16 %v127
    %v269 = vunpack.c.h.b16 %v127
    %v270 = vunpack.c.l.b16 %v128
    %v271 = vunpack.c.h.b16 %v128
    %v272 = vunpack.c.l.b16 %v129
    %v273 = vunpack.c.h.b16 %v129
    %v274 = vunpack.c.l.b16 %v130
    %v275 = vunpack.c.h.b16 %v130
    %v276 = vunpack.c.l.b16 %v131
    %v277 = vunpack.c.h.b16 %v131
    %v278 = vunpack.c.l.b16 %v132
    %v279 = vunpack.c.h.b16 %v132
    %v280 = vunpack.c.l.b16 %v133
    %v281 = vunpack.c.h.b16 %v133
    %v282 = vunpack.c.l.b16 %v134
    %v283 = vunpack.c.h.b16 %v134
    %v284 = vunpack.c.l.b16 %v135
    %v285 = vunpack.c.h.b16 %v135
    %v286 = vunpack.c.l.b16 %v136
    %v287 = vunpack.c.h.b16 %v136
    %v288 = vunpack.c.l.b16 %v137
    %v289 = vunpack.c.h.b16 %v137
    %v290 = vunpack.c.l.b16 %v138
    %v291 = vunpack.c.h.b16 %v138
    %v292 = vunpack.c.l.b16 %v139
    %v293 = vunpack.c.h.b16 %v139
    %v294 = vunpack.c.l.b16 %v140
    %v295 = vunpack.c.h.b16 %v140
    %v296 = vunpack.c.l.b16 %v141
    %v297 = vunpack.c.h.b16 %v141
    %v298 = vunpack.c.l.b16 %v142
    %v299 = vunpack.c.h.b16 %v142
    %v300 = vunpack.c.l.b16 %v143
    %v301 = vunpack.c.h.b16 %v143
    %v302 = vunpack.c.l.b16 %v144
    %v303 = vunpack.c.h.b16 %v144
    %v304 = vunpack.c.l.b16 %v145
    %v305 = vunpack.c.h.b16 %v145
    %v306 = vunpack.c.l.b16 %v146
    %v307 = vunpack.c.h.b16 %v146
    %v308 = vunpack.c.l.b16 %v147
    %v309 = vunpack.c.h.b16 %v147
    %v310 = vunpack.c.l.b16 %v148
    %v311 = vunpack.c.h.b16 %v148
    %v312 = vunpack.c.l.b16 %v149
    %v313 = vunpack.c.h.b16 %v149
    %v314 = vunpack.c.l.b16 %v150
    %v315 = vunpack.c.h.b16 %v150
    %v316 = vunpack.c.l.b16 %v151
    %v317 = vunpack.c.h.b16 %v151
    %v318 = vunpack.c.l.b16 %v152
    %v319 = vunpack.c.h.b16 %v152
    %v320 = vunpack.c.l.b16 %v153
    %v321 = vunpack.c.h.b16 %v153
    %v322 = vunpack.c.l.b16 %v154
    %v323 = vunpack.c.h.b16 %v154
    %v324 = vunpack.c.l.b16 %v155
    %v325 = vunpack.c.h.b16 %v155
    %v326 = vunpack.c.l.b16 %v156
    %v327 = vunpack.c.h.b16 %v156
    %v328 = vunpack.c.l.b16 %v157
    %v329 = vunpack.c.h.b16 %v157
    %v330 = vunpack.c.l.b16 %v158
    %v331 = vunpack.c.h.b16 %v158
    %v332 = vunpack.c.l.b16 %v159
    %v333 = vunpack.c.h.b16 %v159
    %v334 = vunpack.c.l.b16 %v160
    %v335 = vunpack.c.h.b16 %v160
    %v336 = vunpack.c.l.b16 %v161
    %v337 = vunpack.c.h.b16 %v161
    %v338 = vunpack.c.l.b16 %v162
    %v339 = vunpack.c.h.b16 %v162
    %v340 = vunpack.c.l.b16 %v163
    %v341 = vunpack.c.h.b16 %v163
    %v342 = vunpack.c.l.b16 %v164
    %v343 = vunpack.c.h.b16 %v164
    %v344 = vunpack.c.l.b16 %v165
    %v345 = vunpack.c.h.b16 %v165
    %v346 = vunpack.c.l.b16 %v166
    %v347 = vunpack.c.h.b16 %v166
    %v348 = vunpack.c.l.b16 %v167
    %v349 = vunpack.c.h.b16 %v167
    %v350 = vunpack.c.l.b16 %v168
    %v351 = vunpack.c.h.b16 %v168
    %v352 = vunpack.c.l.b16 %v169
    %v353 = vunpack.c.h.b16 %v169
    %v354 = vunpack.c.l.b16 %v170
    %v355 = vunpack.c.h.b16 %v170
    %v356 = vunpack.c.l.b16 %v171
    %v357 = vunpack.c.h.b16 %v171
    %v358 = vunpack.c.l.b16 %v172
    %v359 = vunpack.c.h.b16 %v172
    %v360 = vunpack.c.l.b16 %v173
    %v361 = vunpack.c.h.b16 %v173
    %v362 = vunpack.c.l.b16 %v174
    %v363 = vunpack.c.h.b16 %v174
    %v364 = vunpack.c.l.b16 %v175
    %v365 = vunpack.c.h.b16 %v175
    %v366 = vunpack.c.l.b16 %v176
    %v367 = vunpack.c.h.b16 %v176
    %v368 = vunpack.c.l.b16 %v177
    %v369 = vunpack.c.h.b16 %v177
    %v370 = vunpack.c.l.b16 %v178
    %v371 = vunpack.c.h.b16 %v178
    %v372 = vpack.c.b16 %v248, %v244
    %v373 = vpack.c.b16 %v249, %v245
    %v374 = vpack.c.b16 %v250, %v246
    %v375 = vpack.c.b16 %v251, %v247
    %v376 = vpack.c.b16 %v256, %v252
    %v377 = vpack.c.b16 %v257, %v253
    %v378 = vpack.c.b16 %v258, %v254
    %v379 = vpack.c.b16 %v259, %v255
    %v380 = vpack.c.b16 %v264, %v260
    %v381 = vpack.c.b16 %v265, %v261
    %v382 = vpack.c.b16 %v266, %v262
    %v383 = vpack.c.b16 %v267, %v263
    %v384 = vpack.c.b16 %v272, %v268
    %v385 = vpack.c.b16 %v273, %v269
    %v386 = vpack.c.b16 %v274, %v270
    %v387 = vpack.c.b16 %v275, %v271
    %v388 = vpack.c.b16 %v280, %v276
    %v389 = vpack.c.b16 %v281, %v277
    %v390 = vpack.c.b16 %v282, %v278
    %v391 = vpack.c.b16 %v283, %v279
    %v392 = vpack.c.b16 %v288, %v284
    %v393 = vpack.c.b16 %v289, %v285
    %v394 = vpack.c.b16 %v290, %v286
    %v395 = vpack.c.b16 %v291, %v287
    %v396 = vpack.c.b16 %v296, %v292
    %v397 = vpack.c.b16 %v297, %v293
    %v398 = vpack.c.b16 %v298, %v294
    %v399 = vpack.c.b16 %v299, %v295
    %v400 = vpack.c.b16 %v304, %v300
    %v401 = vpack.c.b16 %v305, %v301
    %v402 = vpack.c.b16 %v306, %v302
    %v403 = vpack.c.b16 %v307, %v303
    %v404 = vpack.c.b16 %v312, %v308
    %v405 = vpack.c.b16 %v313, %v309
    %v406 = vpack.c.b16 %v314, %v310
    %v407 = vpack.c.b16 %v315, %v311
    %v408 = vpack.c.b16 %v320, %v316
    %v409 = vpack.c.b16 %v321, %v317
    %v410 = vpack.c.b16 %v322, %v318
    %v411 = vpack.c.b16 %v323, %v319
    %v412 = vpack.c.b16 %v328, %v324
    %v413 = vpack.c.b16 %v329, %v325
    %v414 = vpack.c.b16 %v330, %v326
    %v415 = vpack.c.b16 %v331, %v327
    %v416 = vpack.c.b16 %v336, %v332
    %v417 = vpack.c.b16 %v337, %v333
    %v418 = vpack.c.b16 %v338, %v334
    %v419 = vpack.c.b16 %v339, %v335
    %v420 = vpack.c.b16 %v344, %v340
    %v421 = vpack.c.b16 %v345, %v341
    %v422 = vpack.c.b16 %v346, %v342
    %v423 = vpack.c.b16 %v347, %v343
    %v424 = vpack.c.b16 %v352, %v348
    %v425 = vpack.c.b16 %v353, %v349
    %v426 = vpack.c.b16 %v354, %v350
    %v427 = vpack.c.b16 %v355, %v351
    %v428 = vpack.c.b16 %v360, %v356
    %v429 = vpack.c.b16 %v361, %v357
    %v430 = vpack.c.b16 %v362, %v358
    %v431 = vpack.c.b16 %v363, %v359
    %v432 = vpack.c.b16 %v368, %v364
    %v433 = vpack.c.b16 %v369, %v365
    %v434 = vpack.c.b16 %v370, %v366
    %v435 = vpack.c.b16 %v371, %v367
    %v501 = vlaneseq
    %v502 = vshrl.u32 %v501, 7
    %v503 = vsub.s32 0, %v502
    %v504 = vrot.slane %v179, %v503
    %v505 = vlaneseq
    %v506 = vshrl.u32 %v505, 7
    %v507 = vsub.s32 1, %v506
    %v508 = vrot.slane %v179, %v507
    %v509 = vlaneseq
    %v510 = vshrl.u32 %v509, 7
    %v511 = vsub.s32 2, %v510
    %v512 = vrot.slane %v179, %v511
    %v513 = vlaneseq
    %v514 = vshrl.u32 %v513, 7
    %v515 = vsub.s32 3, %v514
    %v516 = vrot.slane %v179, %v515
    %521 = vmatprep.subr.bf16.mxu0 %v373
    %522 = vmatpush1.bf16.msra.mxu0 %v372
    %523 = vmatprep.subr.bf16.mxu0 %v377
    %524 = vmatpush1.bf16.msra.mxu0 %v376
    %525 = vmatprep.subr.bf16.mxu0 %v381
    %526 = vmatpush1.bf16.msra.mxu0 %v380
    %527 = vmatprep.subr.bf16.mxu0 %v385
    %528 = vmatpush1.bf16.msra.mxu0 %v384
    %529 = vmatprep.subr.bf16.mxu0 %v389
    %530 = vmatpush1.bf16.msra.mxu0 %v388
    %531 = vmatprep.subr.bf16.mxu0 %v393
    %532 = vmatpush1.bf16.msra.mxu0 %v392
    %533 = vmatprep.subr.bf16.mxu0 %v397
    %534 = vmatpush1.bf16.msra.mxu0 %v396
    %535 = vmatprep.subr.bf16.mxu0 %v401
    %536 = vmatpush1.bf16.msra.mxu0 %v400
    %537 = vmatprep.subr.bf16.mxu0 %v405
    %538 = vmatpush1.bf16.msra.mxu0 %v404
    %539 = vmatprep.subr.bf16.mxu0 %v409
    %540 = vmatpush1.bf16.msra.mxu0 %v408
    %541 = vmatprep.subr.bf16.mxu0 %v413
    %542 = vmatpush1.bf16.msra.mxu0 %v412
    %543 = vmatprep.subr.bf16.mxu0 %v417
    %544 = vmatpush1.bf16.msra.mxu0 %v416
    %545 = vmatprep.subr.bf16.mxu0 %v421
    %546 = vmatpush1.bf16.msra.mxu0 %v420
    %547 = vmatprep.subr.bf16.mxu0 %v425
    %548 = vmatpush1.bf16.msra.mxu0 %v424
    %549 = vmatprep.subr.bf16.mxu0 %v429
    %550 = vmatpush1.bf16.msra.mxu0 %v428
    %551 = vmatprep.subr.bf16.mxu0 %v433
    %552 = vmatpush1.bf16.msra.mxu0 %v432
    %553 = vmatprep.mubr.bf16.mxu0 %v114
    %554 = vmatmul.mubr.bf16.gmra.mrb[0].mxu0 %v113
    %v555 = vpop.f32.mrb[0].mxu0
    %v556 = vadd.f32 %v504, %v555
    %v557 = vpop.f32.mrb[0].mxu0
    %v558 = vadd.f32 %v508, %v557
    %v559 = vpop.f32.mrb[0].mxu0
    %v560 = vpop.f32.mrb[0].mxu0
    %561 = vdwg.mxu0
    %562 = vmatprep.subr.bf16.mxu0 %v375
    %563 = vmatpush1.bf16.msra.mxu0 %v374
    %564 = vmatprep.subr.bf16.mxu0 %v379
    %565 = vmatpush1.bf16.msra.mxu0 %v378
    %566 = vmatprep.subr.bf16.mxu0 %v383
    %567 = vmatpush1.bf16.msra.mxu0 %v382
    %568 = vmatprep.subr.bf16.mxu0 %v387
    %569 = vmatpush1.bf16.msra.mxu0 %v386
    %570 = vmatprep.subr.bf16.mxu0 %v391
    %571 = vmatpush1.bf16.msra.mxu0 %v390
    %572 = vmatprep.subr.bf16.mxu0 %v395
    %573 = vmatpush1.bf16.msra.mxu0 %v394
    %574 = vmatprep.subr.bf16.mxu0 %v399
    %575 = vmatpush1.bf16.msra.mxu0 %v398
    %576 = vmatprep.subr.bf16.mxu0 %v403
    %577 = vmatpush1.bf16.msra.mxu0 %v402
    %578 = vmatprep.subr.bf16.mxu0 %v407
    %579 = vmatpush1.bf16.msra.mxu0 %v406
    %580 = vmatprep.subr.bf16.mxu0 %v411
    %581 = vmatpush1.bf16.msra.mxu0 %v410
    %582 = vmatprep.subr.bf16.mxu0 %v415
    %583 = vmatpush1.bf16.msra.mxu0 %v414
    %584 = vmatprep.subr.bf16.mxu0 %v419
    %585 = vmatpush1.bf16.msra.mxu0 %v418
    %586 = vmatprep.subr.bf16.mxu0 %v423
    %587 = vmatpush1.bf16.msra.mxu0 %v422
    %588 = vmatprep.subr.bf16.mxu0 %v427
    %589 = vmatpush1.bf16.msra.mxu0 %v426
    %590 = vmatprep.subr.bf16.mxu0 %v431
    %591 = vmatpush1.bf16.msra.mxu0 %v430
    %592 = vmatprep.subr.bf16.mxu0 %v435
    %593 = vmatpush1.bf16.msra.mxu0 %v434
    %594 = vmatprep.mubr.bf16.mxu0 %v114
    %595 = vmatmul.mubr.bf16.gmra.mrb[0].mxu0 %v113
    %v596 = vpop.f32.mrb[0].mxu0
    %v597 = vadd.f32 %v512, %v596
    %v598 = vpop.f32.mrb[0].mxu0
    %v599 = vadd.f32 %v516, %v598
    %v600 = vpop.f32.mrb[0].mxu0
    %v601 = vpop.f32.mrb[0].mxu0
    %602 = vdwg.mxu0
    %v603 = vxor.u32 %v556, 2147483648
    %v604 = vxor.u32 %v558, 2147483648
    %v605 = vxor.u32 %v597, 2147483648
    %v606 = vmul.f32 %v603, 1.442695
    %v607 = vpow.pop %v606
    %v608 = vmul.f32 %v604, 1.442695
    %v609 = vpow.pop %v608
    %v610 = vmul.f32 %v605, 1.442695
    %v611 = vpow.pop %v610
    %v612 = vadd.f32 %v607, 1.0
    %v613 = vadd.f32 %v609, 1.0
    %v614 = vadd.f32 %v611, 1.0
    %v615 = vrcp.pop %v612
    %v616 = vmul.f32 1.0, %v615
    %v617 = vrcp.pop %v613
    %v618 = vmul.f32 1.0, %v617
    %v619 = vrcp.pop %v614
    %v620 = vmul.f32 1.0, %v619
    %v621 = vtanh.pop %v599
    %v622 = vmul.f32 %v618, %v112
    %v623 = vmul.f32 %v616, %v621
    %v624 = vadd.f32 %v622, %v623
    %v625 = vtanh.pop %v624
    %v626 = vmul.f32 %v620, %v625
    %627 = vst [vmem:[#allocation2] sm:$0x1] %v626
    %628 = vst [vmem:[#allocation3] sm:$0x1] %v624
    %v629 = vld [vmem:[#allocation2 + $0x1] sm:$0x1]
    %v630 = vld [vmem:[#allocation3 + $0x1] sm:$0x1]
    %v631 = vpack.c.bf16 %v626, %v626
    %v632 = vpack.c.bf16 %v629, %v629
    %v633 = vld [vmem:[#allocation10] sm:$0xff]
    %v634 = vld [vmem:[#allocation10 + $0x8] sm:$0xff]
    %v635 = vld [vmem:[#allocation10 + $0x10] sm:$0xff]
    %v636 = vld [vmem:[#allocation10 + $0x18] sm:$0xff]
    %v637 = vld [vmem:[#allocation10 + $0x20] sm:$0xff]
    %v638 = vld [vmem:[#allocation10 + $0x28] sm:$0xff]
    %v639 = vld [vmem:[#allocation10 + $0x30] sm:$0xff]
    %v640 = vld [vmem:[#allocation10 + $0x38] sm:$0xff]
    %v641 = vld [vmem:[#allocation10 + $0x40] sm:$0xff]
    %v642 = vld [vmem:[#allocation10 + $0x48] sm:$0xff]
    %v643 = vld [vmem:[#allocation10 + $0x50] sm:$0xff]
    %v644 = vld [vmem:[#allocation10 + $0x58] sm:$0xff]
    %v645 = vld [vmem:[#allocation10 + $0x60] sm:$0xff]
    %v646 = vld [vmem:[#allocation10 + $0x68] sm:$0xff]
    %v647 = vld [vmem:[#allocation10 + $0x70] sm:$0xff]
    %v648 = vld [vmem:[#allocation10 + $0x78] sm:$0xff]
    %v649 = vld [vmem:[#allocation10 + $0x80] sm:$0xff]
    %v650 = vld [vmem:[#allocation10 + $0x88] sm:$0xff]
    %v651 = vld [vmem:[#allocation10 + $0x90] sm:$0xff]
    %v652 = vld [vmem:[#allocation10 + $0x98] sm:$0xff]
    %v653 = vld [vmem:[#allocation10 + $0xa0] sm:$0xff]
    %v654 = vld [vmem:[#allocation10 + $0xa8] sm:$0xff]
    %v655 = vld [vmem:[#allocation10 + $0xb0] sm:$0xff]
    %v656 = vld [vmem:[#allocation10 + $0xb8] sm:$0xff]
    %v657 = vld [vmem:[#allocation10 + $0xc0] sm:$0xff]
    %v658 = vld [vmem:[#allocation10 + $0xc8] sm:$0xff]
    %v659 = vld [vmem:[#allocation10 + $0xd0] sm:$0xff]
    %v660 = vld [vmem:[#allocation10 + $0xd8] sm:$0xff]
    %v661 = vld [vmem:[#allocation10 + $0xe0] sm:$0xff]
    %v662 = vld [vmem:[#allocation10 + $0xe8] sm:$0xff]
    %v663 = vld [vmem:[#allocation10 + $0xf0] sm:$0xff]
    %v664 = vld [vmem:[#allocation10 + $0xf8] sm:$0xff]
    %v665 = vld [vmem:[#allocation10 + $0x100] sm:$0xff]
    %v666 = vld [vmem:[#allocation10 + $0x108] sm:$0xff]
    %v667 = vld [vmem:[#allocation10 + $0x110] sm:$0xff]
    %v668 = vld [vmem:[#allocation10 + $0x118] sm:$0xff]
    %v669 = vld [vmem:[#allocation10 + $0x120] sm:$0xff]
    %v670 = vld [vmem:[#allocation10 + $0x128] sm:$0xff]
    %v671 = vld [vmem:[#allocation10 + $0x130] sm:$0xff]
    %v672 = vld [vmem:[#allocation10 + $0x138] sm:$0xff]
    %v673 = vld [vmem:[#allocation10 + $0x140] sm:$0xff]
    %v674 = vld [vmem:[#allocation10 + $0x148] sm:$0xff]
    %v675 = vld [vmem:[#allocation10 + $0x150] sm:$0xff]
    %v676 = vld [vmem:[#allocation10 + $0x158] sm:$0xff]
    %v677 = vld [vmem:[#allocation10 + $0x160] sm:$0xff]
    %v678 = vld [vmem:[#allocation10 + $0x168] sm:$0xff]
    %v679 = vld [vmem:[#allocation10 + $0x170] sm:$0xff]
    %v680 = vld [vmem:[#allocation10 + $0x178] sm:$0xff]
    %v681 = vld [vmem:[#allocation10 + $0x180] sm:$0xff]
    %v682 = vld [vmem:[#allocation10 + $0x188] sm:$0xff]
    %v683 = vld [vmem:[#allocation10 + $0x190] sm:$0xff]
    %v684 = vld [vmem:[#allocation10 + $0x198] sm:$0xff]
    %v685 = vld [vmem:[#allocation10 + $0x1a0] sm:$0xff]
    %v686 = vld [vmem:[#allocation10 + $0x1a8] sm:$0xff]
    %v687 = vld [vmem:[#allocation10 + $0x1b0] sm:$0xff]
    %v688 = vld [vmem:[#allocation10 + $0x1b8] sm:$0xff]
    %v689 = vld [vmem:[#allocation10 + $0x1c0] sm:$0xff]
    %v690 = vld [vmem:[#allocation10 + $0x1c8] sm:$0xff]
    %v691 = vld [vmem:[#allocation10 + $0x1d0] sm:$0xff]
    %v692 = vld [vmem:[#allocation10 + $0x1d8] sm:$0xff]
    %v693 = vld [vmem:[#allocation10 + $0x1e0] sm:$0xff]
    %v694 = vld [vmem:[#allocation10 + $0x1e8] sm:$0xff]
    %v695 = vld [vmem:[#allocation10 + $0x1f0] sm:$0xff]
    %v696 = vld [vmem:[#allocation10 + $0x1f8] sm:$0xff]
    %v697 = vld [vmem:[%s6] sm:$0xf]
    %v762 = vunpack.c.l.b16 %v633
    %v763 = vunpack.c.h.b16 %v633
    %v764 = vunpack.c.l.b16 %v634
    %v765 = vunpack.c.h.b16 %v634
    %v766 = vunpack.c.l.b16 %v635
    %v767 = vunpack.c.h.b16 %v635
    %v768 = vunpack.c.l.b16 %v636
    %v769 = vunpack.c.h.b16 %v636
    %v770 = vunpack.c.l.b16 %v637
    %v771 = vunpack.c.h.b16 %v637
    %v772 = vunpack.c.l.b16 %v638
    %v773 = vunpack.c.h.b16 %v638
    %v774 = vunpack.c.l.b16 %v639
    %v775 = vunpack.c.h.b16 %v639
    %v776 = vunpack.c.l.b16 %v640
    %v777 = vunpack.c.h.b16 %v640
    %v778 = vunpack.c.l.b16 %v641
    %v779 = vunpack.c.h.b16 %v641
    %v780 = vunpack.c.l.b16 %v642
    %v781 = vunpack.c.h.b16 %v642
    %v782 = vunpack.c.l.b16 %v643
    %v783 = vunpack.c.h.b16 %v643
    %v784 = vunpack.c.l.b16 %v644
    %v785 = vunpack.c.h.b16 %v644
    %v786 = vunpack.c.l.b16 %v645
    %v787 = vunpack.c.h.b16 %v645
    %v788 = vunpack.c.l.b16 %v646
    %v789 = vunpack.c.h.b16 %v646
    %v790 = vunpack.c.l.b16 %v647
    %v791 = vunpack.c.h.b16 %v647
    %v792 = vunpack.c.l.b16 %v648
    %v793 = vunpack.c.h.b16 %v648
    %v794 = vunpack.c.l.b16 %v649
    %v795 = vunpack.c.h.b16 %v649
    %v796 = vunpack.c.l.b16 %v650
    %v797 = vunpack.c.h.b16 %v650
    %v798 = vunpack.c.l.b16 %v651
    %v799 = vunpack.c.h.b16 %v651
    %v800 = vunpack.c.l.b16 %v652
    %v801 = vunpack.c.h.b16 %v652
    %v802 = vunpack.c.l.b16 %v653
    %v803 = vunpack.c.h.b16 %v653
    %v804 = vunpack.c.l.b16 %v654
    %v805 = vunpack.c.h.b16 %v654
    %v806 = vunpack.c.l.b16 %v655
    %v807 = vunpack.c.h.b16 %v655
    %v808 = vunpack.c.l.b16 %v656
    %v809 = vunpack.c.h.b16 %v656
    %v810 = vunpack.c.l.b16 %v657
    %v811 = vunpack.c.h.b16 %v657
    %v812 = vunpack.c.l.b16 %v658
    %v813 = vunpack.c.h.b16 %v658
    %v814 = vunpack.c.l.b16 %v659
    %v815 = vunpack.c.h.b16 %v659
    %v816 = vunpack.c.l.b16 %v660
    %v817 = vunpack.c.h.b16 %v660
    %v818 = vunpack.c.l.b16 %v661
    %v819 = vunpack.c.h.b16 %v661
    %v820 = vunpack.c.l.b16 %v662
    %v821 = vunpack.c.h.b16 %v662
    %v822 = vunpack.c.l.b16 %v663
    %v823 = vunpack.c.h.b16 %v663
    %v824 = vunpack.c.l.b16 %v664
    %v825 = vunpack.c.h.b16 %v664
    %v826 = vunpack.c.l.b16 %v665
    %v827 = vunpack.c.h.b16 %v665
    %v828 = vunpack.c.l.b16 %v666
    %v829 = vunpack.c.h.b16 %v666
    %v830 = vunpack.c.l.b16 %v667
    %v831 = vunpack.c.h.b16 %v667
    %v832 = vunpack.c.l.b16 %v668
    %v833 = vunpack.c.h.b16 %v668
    %v834 = vunpack.c.l.b16 %v669
    %v835 = vunpack.c.h.b16 %v669
    %v836 = vunpack.c.l.b16 %v670
    %v837 = vunpack.c.h.b16 %v670
    %v838 = vunpack.c.l.b16 %v671
    %v839 = vunpack.c.h.b16 %v671
    %v840 = vunpack.c.l.b16 %v672
    %v841 = vunpack.c.h.b16 %v672
    %v842 = vunpack.c.l.b16 %v673
    %v843 = vunpack.c.h.b16 %v673
    %v844 = vunpack.c.l.b16 %v674
    %v845 = vunpack.c.h.b16 %v674
    %v846 = vunpack.c.l.b16 %v675
    %v847 = vunpack.c.h.b16 %v675
    %v848 = vunpack.c.l.b16 %v676
    %v849 = vunpack.c.h.b16 %v676
    %v850 = vunpack.c.l.b16 %v677
    %v851 = vunpack.c.h.b16 %v677
    %v852 = vunpack.c.l.b16 %v678
    %v853 = vunpack.c.h.b16 %v678
    %v854 = vunpack.c.l.b16 %v679
    %v855 = vunpack.c.h.b16 %v679
    %v856 = vunpack.c.l.b16 %v680
    %v857 = vunpack.c.h.b16 %v680
    %v858 = vunpack.c.l.b16 %v681
    %v859 = vunpack.c.h.b16 %v681
    %v860 = vunpack.c.l.b16 %v682
    %v861 = vunpack.c.h.b16 %v682
    %v862 = vunpack.c.l.b16 %v683
    %v863 = vunpack.c.h.b16 %v683
    %v864 = vunpack.c.l.b16 %v684
    %v865 = vunpack.c.h.b16 %v684
    %v866 = vunpack.c.l.b16 %v685
    %v867 = vunpack.c.h.b16 %v685
    %v868 = vunpack.c.l.b16 %v686
    %v869 = vunpack.c.h.b16 %v686
    %v870 = vunpack.c.l.b16 %v687
    %v871 = vunpack.c.h.b16 %v687
    %v872 = vunpack.c.l.b16 %v688
    %v873 = vunpack.c.h.b16 %v688
    %v874 = vunpack.c.l.b16 %v689
    %v875 = vunpack.c.h.b16 %v689
    %v876 = vunpack.c.l.b16 %v690
    %v877 = vunpack.c.h.b16 %v690
    %v878 = vunpack.c.l.b16 %v691
    %v879 = vunpack.c.h.b16 %v691
    %v880 = vunpack.c.l.b16 %v692
    %v881 = vunpack.c.h.b16 %v692
    %v882 = vunpack.c.l.b16 %v693
    %v883 = vunpack.c.h.b16 %v693
    %v884 = vunpack.c.l.b16 %v694
    %v885 = vunpack.c.h.b16 %v694
    %v886 = vunpack.c.l.b16 %v695
    %v887 = vunpack.c.h.b16 %v695
    %v888 = vunpack.c.l.b16 %v696
    %v889 = vunpack.c.h.b16 %v696
    %v890 = vpack.c.b16 %v766, %v762
    %v891 = vpack.c.b16 %v767, %v763
    %v892 = vpack.c.b16 %v768, %v764
    %v893 = vpack.c.b16 %v769, %v765
    %v894 = vpack.c.b16 %v774, %v770
    %v895 = vpack.c.b16 %v775, %v771
    %v896 = vpack.c.b16 %v776, %v772
    %v897 = vpack.c.b16 %v777, %v773
    %v898 = vpack.c.b16 %v782, %v778
    %v899 = vpack.c.b16 %v783, %v779
    %v900 = vpack.c.b16 %v784, %v780
    %v901 = vpack.c.b16 %v785, %v781
    %v902 = vpack.c.b16 %v790, %v786
    %v903 = vpack.c.b16 %v791, %v787
    %v904 = vpack.c.b16 %v792, %v788
    %v905 = vpack.c.b16 %v793, %v789
    %v906 = vpack.c.b16 %v798, %v794
    %v907 = vpack.c.b16 %v799, %v795
    %v908 = vpack.c.b16 %v800, %v796
    %v909 = vpack.c.b16 %v801, %v797
    %v910 = vpack.c.b16 %v806, %v802
    %v911 = vpack.c.b16 %v807, %v803
    %v912 = vpack.c.b16 %v808, %v804
    %v913 = vpack.c.b16 %v809, %v805
    %v914 = vpack.c.b16 %v814, %v810
    %v915 = vpack.c.b16 %v815, %v811
    %v916 = vpack.c.b16 %v816, %v812
    %v917 = vpack.c.b16 %v817, %v813
    %v918 = vpack.c.b16 %v822, %v818
    %v919 = vpack.c.b16 %v823, %v819
    %v920 = vpack.c.b16 %v824, %v820
    %v921 = vpack.c.b16 %v825, %v821
    %v922 = vpack.c.b16 %v830, %v826
    %v923 = vpack.c.b16 %v831, %v827
    %v924 = vpack.c.b16 %v832, %v828
    %v925 = vpack.c.b16 %v833, %v829
    %v926 = vpack.c.b16 %v838, %v834
    %v927 = vpack.c.b16 %v839, %v835
    %v928 = vpack.c.b16 %v840, %v836
    %v929 = vpack.c.b16 %v841, %v837
    %v930 = vpack.c.b16 %v846, %v842
    %v931 = vpack.c.b16 %v847, %v843
    %v932 = vpack.c.b16 %v848, %v844
    %v933 = vpack.c.b16 %v849, %v845
    %v934 = vpack.c.b16 %v854, %v850
    %v935 = vpack.c.b16 %v855, %v851
    %v936 = vpack.c.b16 %v856, %v852
    %v937 = vpack.c.b16 %v857, %v853
    %v938 = vpack.c.b16 %v862, %v858
    %v939 = vpack.c.b16 %v863, %v859
    %v940 = vpack.c.b16 %v864, %v860
    %v941 = vpack.c.b16 %v865, %v861
    %v942 = vpack.c.b16 %v870, %v866
    %v943 = vpack.c.b16 %v871, %v867
    %v944 = vpack.c.b16 %v872, %v868
    %v945 = vpack.c.b16 %v873, %v869
    %v946 = vpack.c.b16 %v878, %v874
    %v947 = vpack.c.b16 %v879, %v875
    %v948 = vpack.c.b16 %v880, %v876
    %v949 = vpack.c.b16 %v881, %v877
    %v950 = vpack.c.b16 %v886, %v882
    %v951 = vpack.c.b16 %v887, %v883
    %v952 = vpack.c.b16 %v888, %v884
    %v953 = vpack.c.b16 %v889, %v885
    %v1019 = vlaneseq
    %v1020 = vshrl.u32 %v1019, 7
    %v1021 = vsub.s32 0, %v1020
    %v1022 = vrot.slane %v697, %v1021
    %v1023 = vlaneseq
    %v1024 = vshrl.u32 %v1023, 7
    %v1025 = vsub.s32 1, %v1024
    %v1026 = vrot.slane %v697, %v1025
    %v1027 = vlaneseq
    %v1028 = vshrl.u32 %v1027, 7
    %v1029 = vsub.s32 2, %v1028
    %v1030 = vrot.slane %v697, %v1029
    %v1031 = vlaneseq
    %v1032 = vshrl.u32 %v1031, 7
    %v1033 = vsub.s32 3, %v1032
    %v1034 = vrot.slane %v697, %v1033
    %1039 = vmatprep.subr.bf16.mxu0 %v891
    %1040 = vmatpush1.bf16.msra.mxu0 %v890
    %1041 = vmatprep.subr.bf16.mxu0 %v895
    %1042 = vmatpush1.bf16.msra.mxu0 %v894
    %1043 = vmatprep.subr.bf16.mxu0 %v899
    %1044 = vmatpush1.bf16.msra.mxu0 %v898
    %1045 = vmatprep.subr.bf16.mxu0 %v903
    %1046 = vmatpush1.bf16.msra.mxu0 %v902
    %1047 = vmatprep.subr.bf16.mxu0 %v907
    %1048 = vmatpush1.bf16.msra.mxu0 %v906
    %1049 = vmatprep.subr.bf16.mxu0 %v911
    %1050 = vmatpush1.bf16.msra.mxu0 %v910
    %1051 = vmatprep.subr.bf16.mxu0 %v915
    %1052 = vmatpush1.bf16.msra.mxu0 %v914
    %1053 = vmatprep.subr.bf16.mxu0 %v919
    %1054 = vmatpush1.bf16.msra.mxu0 %v918
    %1055 = vmatprep.subr.bf16.mxu0 %v923
    %1056 = vmatpush1.bf16.msra.mxu0 %v922
    %1057 = vmatprep.subr.bf16.mxu0 %v927
    %1058 = vmatpush1.bf16.msra.mxu0 %v926
    %1059 = vmatprep.subr.bf16.mxu0 %v931
    %1060 = vmatpush1.bf16.msra.mxu0 %v930
    %1061 = vmatprep.subr.bf16.mxu0 %v935
    %1062 = vmatpush1.bf16.msra.mxu0 %v934
    %1063 = vmatprep.subr.bf16.mxu0 %v939
    %1064 = vmatpush1.bf16.msra.mxu0 %v938
    %1065 = vmatprep.subr.bf16.mxu0 %v943
    %1066 = vmatpush1.bf16.msra.mxu0 %v942
    %1067 = vmatprep.subr.bf16.mxu0 %v947
    %1068 = vmatpush1.bf16.msra.mxu0 %v946
    %1069 = vmatprep.subr.bf16.mxu0 %v951
    %1070 = vmatpush1.bf16.msra.mxu0 %v950
    %1071 = vmatprep.mubr.bf16.mxu0 %v632
    %1072 = vmatmul.mubr.bf16.gmra.mrb[0].mxu0 %v631
    %v1073 = vpop.f32.mrb[0].mxu0
    %v1074 = vadd.f32 %v1022, %v1073
    %v1075 = vpop.f32.mrb[0].mxu0
    %v1076 = vadd.f32 %v1026, %v1075
    %v1077 = vpop.f32.mrb[0].mxu0
    %v1078 = vpop.f32.mrb[0].mxu0
    %1079 = vdwg.mxu0
    %1080 = vmatprep.subr.bf16.mxu0 %v893
    %1081 = vmatpush1.bf16.msra.mxu0 %v892
    %1082 = vmatprep.subr.bf16.mxu0 %v897
    %1083 = vmatpush1.bf16.msra.mxu0 %v896
    %1084 = vmatprep.subr.bf16.mxu0 %v901
    %1085 = vmatpush1.bf16.msra.mxu0 %v900
    %1086 = vmatprep.subr.bf16.mxu0 %v905
    %1087 = vmatpush1.bf16.msra.mxu0 %v904
    %1088 = vmatprep.subr.bf16.mxu0 %v909
    %1089 = vmatpush1.bf16.msra.mxu0 %v908
    %1090 = vmatprep.subr.bf16.mxu0 %v913
    %1091 = vmatpush1.bf16.msra.mxu0 %v912
    %1092 = vmatprep.subr.bf16.mxu0 %v917
    %1093 = vmatpush1.bf16.msra.mxu0 %v916
    %1094 = vmatprep.subr.bf16.mxu0 %v921
    %1095 = vmatpush1.bf16.msra.mxu0 %v920
    %1096 = vmatprep.subr.bf16.mxu0 %v925
    %1097 = vmatpush1.bf16.msra.mxu0 %v924
    %1098 = vmatprep.subr.bf16.mxu0 %v929
    %1099 = vmatpush1.bf16.msra.mxu0 %v928
    %1100 = vmatprep.subr.bf16.mxu0 %v933
    %1101 = vmatpush1.bf16.msra.mxu0 %v932
    %1102 = vmatprep.subr.bf16.mxu0 %v937
    %1103 = vmatpush1.bf16.msra.mxu0 %v936
    %1104 = vmatprep.subr.bf16.mxu0 %v941
    %1105 = vmatpush1.bf16.msra.mxu0 %v940
    %1106 = vmatprep.subr.bf16.mxu0 %v945
    %1107 = vmatpush1.bf16.msra.mxu0 %v944
    %1108 = vmatprep.subr.bf16.mxu0 %v949
    %1109 = vmatpush1.bf16.msra.mxu0 %v948
    %1110 = vmatprep.subr.bf16.mxu0 %v953
    %1111 = vmatpush1.bf16.msra.mxu0 %v952
    %1112 = vmatprep.mubr.bf16.mxu0 %v632
    %1113 = vmatmul.mubr.bf16.gmra.mrb[0].mxu0 %v631
    %v1114 = vpop.f32.mrb[0].mxu0
    %v1115 = vadd.f32 %v1030, %v1114
    %v1116 = vpop.f32.mrb[0].mxu0
    %v1117 = vadd.f32 %v1034, %v1116
    %v1118 = vpop.f32.mrb[0].mxu0
    %v1119 = vpop.f32.mrb[0].mxu0
    %1120 = vdwg.mxu0
    %v1121 = vxor.u32 %v1074, 2147483648
    %v1122 = vxor.u32 %v1076, 2147483648
    %v1123 = vxor.u32 %v1115, 2147483648
    %v1124 = vmul.f32 %v1121, 1.442695
    %v1125 = vpow.pop %v1124
    %v1126 = vmul.f32 %v1122, 1.442695
    %v1127 = vpow.pop %v1126
    %v1128 = vmul.f32 %v1123, 1.442695
    %v1129 = vpow.pop %v1128
    %v1130 = vadd.f32 %v1125, 1.0
    %v1131 = vadd.f32 %v1127, 1.0
    %v1132 = vadd.f32 %v1129, 1.0
    %v1133 = vrcp.pop %v1130
    %v1134 = vmul.f32 1.0, %v1133
    %v1135 = vrcp.pop %v1131
    %v1136 = vmul.f32 1.0, %v1135
    %v1137 = vrcp.pop %v1132
    %v1138 = vmul.f32 1.0, %v1137
    %v1139 = vtanh.pop %v1117
    %v1140 = vmul.f32 %v1136, %v630
    %v1141 = vmul.f32 %v1134, %v1139
    %v1142 = vadd.f32 %v1140, %v1141
    %v1143 = vtanh.pop %v1142
    %v1144 = vmul.f32 %v1138, %v1143
    %1145 = vst [vmem:[#allocation2 + $0x1] sm:$0x1] %v1144
    %1146 = vst [vmem:[#allocation3 + $0x1] sm:$0x1] %v1142
    %v1147 = vpack.c.bf16 %v1144, %v1144
    %v1148 = vld [vmem:[#allocation12] sm:$0xf]
    %v1149 = vld [vmem:[#allocation12 + $0x4] sm:$0xf]
    %v1150 = vld [vmem:[#allocation12 + $0x8] sm:$0xf]
    %v1151 = vld [vmem:[#allocation12 + $0xc] sm:$0xf]
    %v1152 = vld [vmem:[#allocation12 + $0x10] sm:$0xf]
    %v1153 = vld [vmem:[#allocation12 + $0x14] sm:$0xf]
    %v1154 = vld [vmem:[#allocation12 + $0x18] sm:$0xf]
    %v1155 = vld [vmem:[#allocation12 + $0x1c] sm:$0xf]
    %v1156 = vld [vmem:[#allocation12 + $0x20] sm:$0xf]
    %v1157 = vld [vmem:[#allocation12 + $0x24] sm:$0xf]
    %v1158 = vld [vmem:[#allocation12 + $0x28] sm:$0xf]
    %v1159 = vld [vmem:[#allocation12 + $0x2c] sm:$0xf]
    %v1160 = vld [vmem:[#allocation12 + $0x30] sm:$0xf]
    %v1161 = vld [vmem:[#allocation12 + $0x34] sm:$0xf]
    %v1162 = vld [vmem:[#allocation12 + $0x38] sm:$0xf]
    %v1163 = vld [vmem:[#allocation12 + $0x3c] sm:$0xf]
    %v1164 = vld [vmem:[%s8] sm:$0x1]
    %v1181 = vunpack.c.l.b16 %v1148
    %v1182 = vunpack.c.l.b16 %v1149
    %v1183 = vunpack.c.l.b16 %v1150
    %v1184 = vunpack.c.l.b16 %v1151
    %v1185 = vunpack.c.l.b16 %v1152
    %v1186 = vunpack.c.l.b16 %v1153
    %v1187 = vunpack.c.l.b16 %v1154
    %v1188 = vunpack.c.l.b16 %v1155
    %v1189 = vunpack.c.l.b16 %v1156
    %v1190 = vunpack.c.l.b16 %v1157
    %v1191 = vunpack.c.l.b16 %v1158
    %v1192 = vunpack.c.l.b16 %v1159
    %v1193 = vunpack.c.l.b16 %v1160
    %v1194 = vunpack.c.l.b16 %v1161
    %v1195 = vunpack.c.l.b16 %v1162
    %v1196 = vunpack.c.l.b16 %v1163
    %v1197 = vpack.c.b16 %v1182, %v1181
    %v1198 = vpack.c.b16 %v1184, %v1183
    %v1199 = vpack.c.b16 %v1186, %v1185
    %v1200 = vpack.c.b16 %v1188, %v1187
    %v1201 = vpack.c.b16 %v1190, %v1189
    %v1202 = vpack.c.b16 %v1192, %v1191
    %v1203 = vpack.c.b16 %v1194, %v1193
    %v1204 = vpack.c.b16 %v1196, %v1195
    %1213 = vmatprep.subr.bf16.mxu0 0
    %1214 = vmatpush1.bf16.msra.mxu0 %v1197
    %1215 = vmatprep.subr.bf16.mxu0 0
    %1216 = vmatpush1.bf16.msra.mxu0 %v1198
    %1217 = vmatprep.subr.bf16.mxu0 0
    %1218 = vmatpush1.bf16.msra.mxu0 %v1199
    %1219 = vmatprep.subr.bf16.mxu0 0
    %1220 = vmatpush1.bf16.msra.mxu0 %v1200
    %1221 = vmatprep.subr.bf16.mxu0 0
    %1222 = vmatpush1.bf16.msra.mxu0 %v1201
    %1223 = vmatprep.subr.bf16.mxu0 0
    %1224 = vmatpush1.bf16.msra.mxu0 %v1202
    %1225 = vmatprep.subr.bf16.mxu0 0
    %1226 = vmatpush1.bf16.msra.mxu0 %v1203
    %1227 = vmatprep.subr.bf16.mxu0 0
    %1228 = vmatpush1.bf16.msra.mxu0 %v1204
    %1229 = vmatprep.subr.bf16.mxu0 0
    %1230 = vmatpush1.bf16.msra.mxu0 0
    %1231 = vmatprep.subr.bf16.mxu0 0
    %1232 = vmatpush1.bf16.msra.mxu0 0
    %1233 = vmatprep.subr.bf16.mxu0 0
    %1234 = vmatpush1.bf16.msra.mxu0 0
    %1235 = vmatprep.subr.bf16.mxu0 0
    %1236 = vmatpush1.bf16.msra.mxu0 0
    %1237 = vmatprep.subr.bf16.mxu0 0
    %1238 = vmatpush1.bf16.msra.mxu0 0
    %1239 = vmatprep.subr.bf16.mxu0 0
    %1240 = vmatpush1.bf16.msra.mxu0 0
    %1241 = vmatprep.subr.bf16.mxu0 0
    %1242 = vmatpush1.bf16.msra.mxu0 0
    %1243 = vmatprep.subr.bf16.mxu0 0
    %1244 = vmatpush1.bf16.msra.mxu0 0
    %1245 = vmatprep.mubr.bf16.mxu0 0
    %1246 = vmatmul.mubr.bf16.gmra.mrb[0].mxu0 %v1147
    %v1247 = vpop.f32.mrb[0].mxu0
    %v1248 = vadd.f32 %v1164, %v1247
    %v1249 = vpop.f32.mrb[0].mxu0
    %v1250 = vpop.f32.mrb[0].mxu0
    %v1251 = vpop.f32.mrb[0].mxu0
    %1252 = vdwg.mxu0
    %vm1253 = vcmask 1040384
    %v1254 = vsel %vm1253, %v1248, -inf
    %1255 = vmax.xlane.f32.xlu0 %v1254
    %v1256 = vpop.xlane.xlu0 %1255
    %v1257 = vsub.f32 %v1248, %v1256
    %v1258 = vmul.f32 %v1257, 1.442695
    %v1259 = vpow.pop %v1258
    %v1260 = vsel %vm1253, %v1259, 0.0
    %1261 = vadd.xlane.f32.xlu0 %v1260
    %v1262 = vpop.xlane.xlu0 %1261
    %v1263 = vlog2.pop %v1262
    %v1264 = vmul.f32 %v1263, 0.6931472
    %v1265 = vadd.f32 %v1264, %v1256
    %v1266 = vsub.f32 %v1248, %v1265
    %1267 = vst [vmem:[#allocation13] sm:$0x1] %v1266
    // Predicated region
    $region62: #{_decoder_forward.1} parent=1 // pred_check
      %p1268 = pneg %p102
    $region63: #{_decoder_forward.1} parent=1 // pred_check_branch
      %1270 = sbr.rel (%p1268) target = $region65
    $region64: #{_decoder_forward.1} parent=1 // pred_region
      %v1271 = vld [vmem:[#allocation2] sm:$0x3]
      %1272 = vst [vmem:[#allocation14] sm:$0x3] %v1271
      %v1273 = vld [vmem:[#allocation3] sm:$0x3]
      %1274 = vst [vmem:[#allocation16] sm:$0x3] %v1273
    $region65: #{_decoder_forward.1} parent=1 // pred_fallthru
      _
    // Predicated region
    $region66: #{_decoder_forward.1} parent=1 // pred_check
      _
    $region67: #{_decoder_forward.1} parent=1 // pred_check_branch
      %1276 = sbr.rel (0) target = $region69
    $region68: #{_decoder_forward.1} parent=1 // pred_region
      %s1278 = ssub.s32 16, 16
      %1279 = vsyncadd [#allocation6], %s1278
      %s1281 = sshll.u32 [#allocation13], 4
      %s1282 = int_to_ptr.vmem [resolvable:$true] %s1281
      %1284 = dma.vmem_to_hbm [thread:$0]  %s1282, 16, %s9, [#allocation6]
    $region69: #{_decoder_forward.1} parent=1 // pred_fallthru
      _
    // Predicated region
    $region70: #{_decoder_forward.1} parent=1 // pred_check
      _
    $region71: #{_decoder_forward.1} parent=1 // pred_check_branch
      %1286 = sbr.rel (0) target = $region73
    $region72: #{_decoder_forward.1} parent=1 // pred_region
      %s1288 = ssub.s32 32, 32
      %1289 = vsyncadd [#allocation15], %s1288
      %s1291 = sshll.u32 [#allocation14], 4
      %s1292 = int_to_ptr.vmem [resolvable:$true] %s1291
      %1294 = dma.vmem_to_hbm [thread:$0]  %s1292, 32, %s10, [#allocation15]
    $region73: #{_decoder_forward.1} parent=1 // pred_fallthru
      _
    // Predicated region
    $region74: #{_decoder_forward.1} parent=1 // pred_check
      _
    $region75: #{_decoder_forward.1} parent=1 // pred_check_branch
      %1296 = sbr.rel (0) target = $region77
    $region76: #{_decoder_forward.1} parent=1 // pred_region
      %s1298 = ssub.s32 32, 32
      %1299 = vsyncadd [#allocation15], %s1298
      %s1301 = sshll.u32 [#allocation16], 4
      %s1302 = int_to_ptr.vmem [resolvable:$true] %s1301
      %1304 = dma.vmem_to_hbm [thread:$0]  %s1302, 32, %s11, [#allocation15]
    $region77: #{_decoder_forward.1} parent=1 // pred_fallthru
      _
    // Predicated region
    $region78: #{_decoder_forward.1} parent=1 // pred_check
      _
    $region79: #{_decoder_forward.1} parent=1 // pred_check_branch
      %1306 = sbr.rel (0) target = $region81
    $region80: #{_decoder_forward.1} parent=1 // pred_region
      %1307 = dma.done [#allocation6], 16
    $region81: #{_decoder_forward.1} parent=1 // pred_fallthru
      _
    // Predicated region
    $region82: #{_decoder_forward.1} parent=1 // pred_check
      _
    $region83: #{_decoder_forward.1} parent=1 // pred_check_branch
      %1309 = sbr.rel (0) target = $region85
    $region84: #{_decoder_forward.1} parent=1 // pred_region
      %1310 = dma.done [#allocation15], 32
    $region85: #{_decoder_forward.1} parent=1 // pred_fallthru
      _
    // Predicated region
    $region86: #{_decoder_forward.1} parent=1 // pred_check
      _
    $region87: #{_decoder_forward.1} parent=1 // pred_check_branch
      %1312 = sbr.rel (0) target = $region89
    $region88: #{_decoder_forward.1} parent=1 // pred_region
      %1313 = dma.done [#allocation15], 32
    $region89: #{_decoder_forward.1} parent=1 // pred_fallthru
      _
    %1314 = vsyncpa [#allocation5], 1
    %1315 = vsyncpa [#allocation8], 1
    %1316 = vsyncpa [#allocation11], 1
    %1317 = vsyncpa [#allocation6], 1
    %1318 = vsyncpa [#allocation15], 1

</llo_original>
